<compile_context>
chip_gen: v5e
topology: v5e:2x2
jax: 0.10.0
libtpu: 0.0.40
codegen_flags: <defaults>
</compile_context>

<pallas_src>
import functools

import jax
import jax.numpy as jnp
from jax.experimental import pallas as pl
from jax.experimental.pallas import tpu as pltpu


# ----------------------------------------------------------------------------
# In-kernel helpers
# ----------------------------------------------------------------------------
def _gelu(x):
    # tanh approximation of GELU (see TODO above)
    return 0.5 * x * (1.0 + jnp.tanh(0.7978845608028654 * (x + 0.044715 * x * x * x)))


def _row_tile(n, max_bn=512):
    """Adaptive token-row tile: big tiles when possible, minimal padding when small."""
    if n >= max_bn:
        return max_bn
    return max(8, ((n + 7) // 8) * 8)


# ----------------------------------------------------------------------------
# Kernel 1: fused matmul + bias (+ GELU) (+ elementwise gate) (+ residual*scale+shift)
# ----------------------------------------------------------------------------
def _fused_mm_kernel(*refs, act, has_gate, has_res):
    idx = 0
    x_ref = refs[idx]; idx += 1
    w_ref = refs[idx]; idx += 1
    b_ref = refs[idx]; idx += 1
    g_ref = None
    if has_gate:
        g_ref = refs[idx]; idx += 1
    r_ref = s_ref = t_ref = None
    if has_res:
        r_ref = refs[idx]; s_ref = refs[idx + 1]; t_ref = refs[idx + 2]; idx += 3
    o_ref = refs[idx]

    acc = jnp.dot(x_ref[...], w_ref[...], preferred_element_type=jnp.float32)
    acc = acc + b_ref[...].astype(jnp.float32)
    if act == "gelu":
        acc = _gelu(acc)
    if has_gate:
        acc = acc * g_ref[...].astype(jnp.float32)
    if has_res:
        acc = acc + (r_ref[...].astype(jnp.float32) * s_ref[...].astype(jnp.float32)
                     + t_ref[...].astype(jnp.float32))
    o_ref[...] = acc.astype(o_ref.dtype)


def fused_matmul(x, w, b, *, act="none", gate=None, res=None,
                 res_scale=None, res_shift=None, max_bn=512):
    """x: (N, K), w: (K, M), b: (M,).
    out = act(x @ w + b) [* gate] [+ res*res_scale + res_shift]   -> (N, M)."""
    N, K = x.shape
    M = w.shape[1]
    bn = _row_tile(N, max_bn)
    Np = pl.cdiv(N, bn) * bn
    pad = Np - N

    def padrows(a):
        return jnp.pad(a, ((0, pad), (0, 0))) if pad else a

    args = [padrows(x), w, b.reshape(1, M)]
    in_specs = [
        pl.BlockSpec((bn, K), lambda i: (i, 0)),
        pl.BlockSpec((K, M), lambda i: (0, 0)),
        pl.BlockSpec((1, M), lambda i: (0, 0)),
    ]
    has_gate = gate is not None
    has_res = res is not None
    if has_gate:
        args.append(padrows(gate))
        in_specs.append(pl.BlockSpec((bn, M), lambda i: (i, 0)))
    if has_res:
        args.extend([padrows(res), res_scale.reshape(1, M), res_shift.reshape(1, M)])
        in_specs.extend([
            pl.BlockSpec((bn, M), lambda i: (i, 0)),
            pl.BlockSpec((1, M), lambda i: (0, 0)),
            pl.BlockSpec((1, M), lambda i: (0, 0)),
        ])

    out = pl.pallas_call(
        functools.partial(_fused_mm_kernel, act=act, has_gate=has_gate, has_res=has_res),
        out_shape=jax.ShapeDtypeStruct((Np, M), x.dtype),
        grid_spec=pltpu.PrefetchScalarGridSpec(
            num_scalar_prefetch=0,
            grid=(Np // bn,),
            in_specs=in_specs,
            out_specs=pl.BlockSpec((bn, M), lambda i: (i, 0)),
        ),
        compiler_params=pltpu.CompilerParams(dimension_semantics=("parallel",)),
    )(*args)
    return out[:N] if pad else out


# ----------------------------------------------------------------------------
# Kernel 2: per-token LayerNorm over channel dim (stage norm)
# ----------------------------------------------------------------------------
def _layernorm_kernel(x_ref, g_ref, b_ref, o_ref, *, eps):
    x = x_ref[...].astype(jnp.float32)
    mu = jnp.mean(x, axis=-1, keepdims=True)
    xc = x - mu
    var = jnp.mean(xc * xc, axis=-1, keepdims=True)
    y = xc * jax.lax.rsqrt(var + eps)
    o_ref[...] = (y * g_ref[...] + b_ref[...]).astype(o_ref.dtype)


def layernorm_tokens(x, g, b, eps=1e-5, max_bn=512):
    N, C = x.shape
    bn = _row_tile(N, max_bn)
    Np = pl.cdiv(N, bn) * bn
    if Np != N:
        x = jnp.pad(x, ((0, Np - N), (0, 0)))
    out = pl.pallas_call(
        functools.partial(_layernorm_kernel, eps=eps),
        out_shape=jax.ShapeDtypeStruct((Np, C), x.dtype),
        grid_spec=pltpu.PrefetchScalarGridSpec(
            num_scalar_prefetch=0,
            grid=(Np // bn,),
            in_specs=[
                pl.BlockSpec((bn, C), lambda i: (i, 0)),
                pl.BlockSpec((1, C), lambda i: (0, 0)),
                pl.BlockSpec((1, C), lambda i: (0, 0)),
            ],
            out_specs=pl.BlockSpec((bn, C), lambda i: (i, 0)),
        ),
        compiler_params=pltpu.CompilerParams(dimension_semantics=("parallel",)),
    )(x, g.reshape(1, C), b.reshape(1, C))
    return out[:N]


# ----------------------------------------------------------------------------
# Kernel 3: depthwise 3-D conv (stride 1, arbitrary dilation), per-batch grid,
# plane-wise accumulation (one output depth plane at a time).
# ----------------------------------------------------------------------------
def _dwconv_kernel(x_ref, w_ref, b_ref, o_ref, *, k, dil, dims, act):
    D, H, W, C = dims
    w = w_ref[...].astype(jnp.float32)        # (k^3, C)
    bias = b_ref[...].astype(jnp.float32)     # (1, C)

    def plane(do, carry):
        acc = jnp.zeros((H, W, C), jnp.float32)
        t = 0
        for kd in range(k):
            for kh in range(k):
                for kw in range(k):
                    sl = x_ref[pl.ds(do + kd * dil, 1),
                               kh * dil:kh * dil + H,
                               kw * dil:kw * dil + W, :]
                    acc = acc + sl[0].astype(jnp.float32) * w[t]
                    t += 1
        acc = acc + bias
        if act == "gelu":
            acc = _gelu(acc)
        o_ref[pl.ds(do, 1)] = acc.astype(o_ref.dtype)[None]
        return carry

    jax.lax.fori_loop(0, D, plane, 0)


def dwconv3d(x, w, b, *, k, dilation, padding, act="none"):
    """x: (B, D, H, W, C), w: (k^3, C), b: (C,).  'same'-size depthwise conv."""
    B, D, H, W, C = x.shape
    p = padding
    # TODO(synk): the zero-pad still round-trips HBM; an in-kernel padded VMEM
    # scratch (or masked halo reads) would remove this traffic.
    xp = jnp.pad(x, ((0, 0), (p, p), (p, p), (p, p), (0, 0)))
    Dp, Hp, Wp = D + 2 * p, H + 2 * p, W + 2 * p
    out = pl.pallas_call(
        functools.partial(_dwconv_kernel, k=k, dil=dilation, dims=(D, H, W, C), act=act),
        out_shape=jax.ShapeDtypeStruct((B, D, H, W, C), x.dtype),
        grid_spec=pltpu.PrefetchScalarGridSpec(
            num_scalar_prefetch=0,
            grid=(B,),
            in_specs=[
                pl.BlockSpec((None, Dp, Hp, Wp, C), lambda bi: (bi, 0, 0, 0, 0)),
                pl.BlockSpec((k * k * k, C), lambda bi: (0, 0)),
                pl.BlockSpec((1, C), lambda bi: (0, 0)),
            ],
            out_specs=pl.BlockSpec((None, D, H, W, C), lambda bi: (bi, 0, 0, 0, 0)),
        ),
        compiler_params=pltpu.CompilerParams(dimension_semantics=("parallel",)),
    )(xp, w, b.reshape(1, C))
    return out


# ----------------------------------------------------------------------------
# Patch embedding: im2col + fused matmul with BatchNorm folded into the weights
# ----------------------------------------------------------------------------
def extract_patches(x, k, s, p):
    """im2col for a 3-D conv.  Returns (B, Do, Ho, Wo, k^3 * Cin), tap-major."""
    B, D, H, W, C = x.shape
    xp = jnp.pad(x, ((0, 0), (p, p), (p, p), (p, p), (0, 0)))
    Dp, Hp, Wp = D + 2 * p, H + 2 * p, W + 2 * p
    Do = (Dp - k) // s + 1
    Ho = (Hp - k) // s + 1
    Wo = (Wp - k) // s + 1
    cols = []
    for kd in range(k):
        for kh in range(k):
            for kw in range(k):
                cols.append(
                    xp[:, kd:kd + (Do - 1) * s + 1:s,
                          kh:kh + (Ho - 1) * s + 1:s,
                          kw:kw + (Wo - 1) * s + 1:s, :]
                )
    patches = jnp.stack(cols, axis=-2)  # (B, Do, Ho, Wo, k^3, C)
    return patches.reshape(B, Do, Ho, Wo, k * k * k * C), (Do, Ho, Wo)


def patch_embed(x, p, k, s, eps=1e-5):
    """OverlapPatchEmbed: strided Conv3d (im2col + fused matmul), BN folded in."""
    patches, (Do, Ho, Wo) = extract_patches(x, k, s, k // 2)
    B = x.shape[0]
    # eval-mode BN (running_mean=0, running_var=1) folded into conv weights
    scale = p["bn_g"] / jnp.sqrt(1.0 + eps)
    w = p["w"] * scale[None, :]
    b = p["b"] * scale + p["bn_b"]
    y = fused_matmul(patches.reshape(-1, patches.shape[-1]), w, b)
    return y.reshape(B, Do, Ho, Wo, -1)


# ----------------------------------------------------------------------------
# VAN block:  x += ls1 * Attention(BN1(x));  x += ls2 * Mlp(BN2(x))
# All per-channel affines (BN, layer-scale) are folded into matmul weights and
# the residual adds / LKA gate are fused into the matmul epilogues.
# ----------------------------------------------------------------------------
def van_block(x, p, eps=1e-5):
    B, D, H, W, C = x.shape
    xt = x.reshape(-1, C)

    # ---- attention branch ---------------------------------------------------
    s1 = p["norm1_g"] / jnp.sqrt(1.0 + eps)    # eval BN: scale
    t1 = p["norm1_b"]                          # eval BN: shift
    ls1 = p["ls1"]
    ap = p["attn"]
    w_p1 = s1[:, None] * ap["proj1_w"]                   # BN folded into proj1
    b_p1 = t1 @ ap["proj1_w"] + ap["proj1_b"]
    w_p2 = ap["proj2_w"] * ls1[None, :]                  # layer-scale into proj2
    b_p2 = ap["proj2_b"] * ls1
    rscale1 = 1.0 + ls1 * s1                             # outer + inner shortcut
    rshift1 = ls1 * t1

    # u = GELU(proj1(BN1(x)))
    u = fused_matmul(xt, w_p1, b_p1, act="gelu")
    u_sp = u.reshape(B, D, H, W, C)
    # LKA: 5x5x5 dw -> 7x7x7 dil-3 dw -> 1x1x1 conv, gated by u (fused)
    a = dwconv3d(u_sp, ap["conv0_w"], ap["conv0_b"], k=5, dilation=1, padding=2)
    a = dwconv3d(a, ap["convsp_w"], ap["convsp_b"], k=7, dilation=3, padding=9)
    a = fused_matmul(a.reshape(-1, C), ap["conv1_w"], ap["conv1_b"], gate=u)
    # proj2 + (outer residual x) + (inner shortcut ls1*BN1(x)), all fused:
    #   x <- x*(1+ls1*s1) + ls1*t1 + ls1*(a@W2 + b2)
    xt = fused_matmul(a, w_p2, b_p2, res=xt, res_scale=rscale1, res_shift=rshift1)

    # ---- MLP branch ----------------------------------------------------------
    s2 = p["norm2_g"] / jnp.sqrt(1.0 + eps)
    t2 = p["norm2_b"]
    ls2 = p["ls2"]
    mp = p["mlp"]
    hidden = mp["fc1_w"].shape[1]
    w_f1 = s2[:, None] * mp["fc1_w"]                     # BN folded into fc1
    b_f1 = t2 @ mp["fc1_w"] + mp["fc1_b"]
    w_f2 = mp["fc2_w"] * ls2[None, :]                    # layer-scale into fc2
    b_f2 = mp["fc2_b"] * ls2

    h = fused_matmul(xt, w_f1, b_f1).reshape(B, D, H, W, hidden)
    h = dwconv3d(h, mp["dw_w"], mp["dw_b"], k=3, dilation=1, padding=1, act="gelu")
    xt = fused_matmul(h.reshape(-1, hidden), w_f2, b_f2,
                      res=xt,
                      res_scale=jnp.ones((C,), xt.dtype),
                      res_shift=jnp.zeros((C,), xt.dtype))
    return xt.reshape(B, D, H, W, C)


def stage_layernorm(x, g, b):
    B, D, H, W, C = x.shape
    y = layernorm_tokens(x.reshape(-1, C), g, b)
    return y.reshape(x.shape)


# ----------------------------------------------------------------------------
# Decoder: fuse consecutive ConvTranspose3d(k=2, s=2) stages into one tap-major
# matmul + a single pixel shuffle per group.
# ----------------------------------------------------------------------------
def _fuse_deconvs(group):
    """group: list of {'w': (Cin, 8*Cout), 'b': (Cout,)} (k=2,s=2 deconvs).
    Returns (wf (Cin, S^3, Cout_last), bf (S^3, Cout_last), S)."""
    w0 = group[0]["w"]
    b0 = group[0]["b"]
    cin = w0.shape[0]
    c0 = b0.shape[0]
    wf = w0.reshape(cin, 8, c0)
    bf = jnp.broadcast_to(b0, (8, c0))
    sf = 2
    for st in group[1:]:
        wb = st["w"]
        bb = st["b"]
        cmid = wb.shape[0]
        co = bb.shape[0]
        wb3 = wb.reshape(cmid, 8, co)
        wnew = jnp.einsum("iam,mbo->iabo", wf, wb3)        # (Cin, Ta, 8, co)
        bnew = jnp.einsum("am,mbo->abo", bf, wb3) + bb     # (Ta, 8, co)
        snew = sf * 2
        # tap reorder: (da,ha,wa, db,hb,wb) -> (da,db, ha,hb, wa,wb) so the fused
        # tap index is row-major over (d, h, w) with d = 2*da + db, etc.
        wnew = wnew.reshape(cin, sf, sf, sf, 2, 2, 2, co)
        wnew = wnew.transpose(0, 1, 4, 2, 5, 3, 6, 7).reshape(cin, snew ** 3, co)
        bnew = bnew.reshape(sf, sf, sf, 2, 2, 2, co)
        bnew = bnew.transpose(0, 3, 1, 4, 2, 5, 6).reshape(snew ** 3, co)
        wf, bf, sf = wnew, bnew, snew
    return wf, bf, sf


def _group_deconvs(decs):
    """Fuse in pairs; a trailing odd stage joins the last group (5 -> [2, 3])."""
    groups, i, n = [], 0, len(decs)
    while i < n:
        take = 3 if n - i == 3 else (2 if n - i >= 2 else 1)
        groups.append(decs[i:i + take])
        i += take
    return groups


def apply_fused_deconv(x, wf, bf, scale):
    """x: (B,D,H,W,Cin) -> (B, D*scale, H*scale, W*scale, Cout)."""
    B, D, H, W, Cin = x.shape
    T = scale ** 3
    Cout = wf.shape[-1]
    y = fused_matmul(x.reshape(-1, Cin), wf.reshape(Cin, T * Cout), bf.reshape(T * Cout))
    y = y.reshape(B, D, H, W, scale, scale, scale, Cout)
    # TODO(synk): pixel shuffle is a wrapper-side transpose; could be folded into
    # a lane-dense out_spec inside the matmul kernel.
    y = y.transpose(0, 1, 4, 2, 5, 3, 6, 7)
    return y.reshape(B, D * scale, H * scale, W * scale, Cout)


# ----------------------------------------------------------------------------
# Full forward
# ----------------------------------------------------------------------------
def van_forward(x_ncdhw, params, cfg):
    # NCDHW -> channels-last
    x = jnp.transpose(x_ncdhw, (0, 2, 3, 4, 1))
    for i in range(cfg["num_stages"]):
        sp = params["stages"][i]
        k = 7 if i == 0 else 3
        s = 4 if i == 0 else 2
        x = patch_embed(x, sp["patch_embed"], k, s)
        for bp in sp["blocks"]:
            x = van_block(x, bp)
        x = stage_layernorm(x, sp["norm_g"], sp["norm_b"])
    # VAN.forward takes the LAST stage output, then the deconv upsampling head
    # TODO(synk): when porting real PyTorch ConvTranspose3d weights
    # ((Cin,Cout,2,2,2)), verify the tap-major (Cin, 8*Cout) permutation.
    for group in _group_deconvs(params["deconv"]):
        wf, bf, scale = _fuse_deconvs(group)
        x = apply_fused_deconv(x, wf, bf, scale)
    # back to NCDHW
    return jnp.transpose(x, (0, 4, 1, 2, 3))


# ----------------------------------------------------------------------------
# Deterministic parameter init (synthetic; shapes follow the module __init__)
# ----------------------------------------------------------------------------
def init_params(cfg, seed=0):
    key = jax.random.PRNGKey(seed)

    def nxt(shape, scale=0.02):
        nonlocal key
        key, sub = jax.random.split(key)
        return scale * jax.random.normal(sub, shape, jnp.float32)

    embed_dims = cfg["embed_dims"]
    mlp_ratios = cfg["mlp_ratios"]
    depths = cfg["depths"]

    stages = []
    in_c = cfg["in_channels"]
    for i in range(cfg["num_stages"]):
        dim = embed_dims[i]
        k = 7 if i == 0 else 3
        pe = {
            "w": nxt((k ** 3 * in_c, dim)),
            "b": nxt((dim,), 0.01),
            "bn_g": jnp.ones((dim,), jnp.float32),
            "bn_b": jnp.zeros((dim,), jnp.float32),
        }
        blocks = []
        hidden = dim * mlp_ratios[i]
        for _ in range(depths[i]):
            blocks.append({
                "norm1_g": jnp.ones((dim,), jnp.float32),
                "norm1_b": jnp.zeros((dim,), jnp.float32),
                "norm2_g": jnp.ones((dim,), jnp.float32),
                "norm2_b": jnp.zeros((dim,), jnp.float32),
                "ls1": jnp.full((dim,), 1e-2, jnp.float32),
                "ls2": jnp.full((dim,), 1e-2, jnp.float32),
                "attn": {
                    "proj1_w": nxt((dim, dim)), "proj1_b": nxt((dim,), 0.01),
                    "conv0_w": nxt((125, dim)), "conv0_b": nxt((dim,), 0.01),
                    "convsp_w": nxt((343, dim)), "convsp_b": nxt((dim,), 0.01),
                    "conv1_w": nxt((dim, dim)), "conv1_b": nxt((dim,), 0.01),
                    "proj2_w": nxt((dim, dim)), "proj2_b": nxt((dim,), 0.01),
                },
                "mlp": {
                    "fc1_w": nxt((dim, hidden)), "fc1_b": nxt((hidden,), 0.01),
                    "dw_w": nxt((27, hidden)), "dw_b": nxt((hidden,), 0.01),
                    "fc2_w": nxt((hidden, dim)), "fc2_b": nxt((dim,), 0.01),
                },
            })
        stages.append({
            "patch_embed": pe,
            "blocks": blocks,
            "norm_g": jnp.ones((dim,), jnp.float32),
            "norm_b": jnp.zeros((dim,), jnp.float32),
        })
        in_c = dim

    # decoder: 5x ConvTranspose3d(k=2, s=2), channels 128->64->32->16->8->out
    c = embed_dims[-1]
    chans = [c, c // 2, c // 4, c // 8, c // 16, cfg["out_channels"]]
    decs = []
    for i in range(5):
        cin, cout = chans[i], chans[i + 1]
        decs.append({"w": nxt((cin, 8 * cout)), "b": nxt((cout,), 0.01)})

    return {"stages": stages, "deconv": decs}


# ----------------------------------------------------------------------------
if __name__ == "__main__":
    cfg = dict(
        embed_dims=[16, 32, 64, 128],
        mlp_ratios=[2, 2, 2, 2],
        depths=[1, 1, 1, 1],
        num_stages=4,
        in_channels=1,
        out_channels=1,
        dropout_path_rate=0.0,   # drop_path is identity in this (inference) kernel
    )
    params = init_params(cfg, seed=0)

    key = jax.random.PRNGKey(0)
    x = jax.random.normal(key, (2, 1, 32, 32, 32), jnp.float32)  # NCDHW, like torch

    out = van_forward(x, params, cfg)
    out = jax.block_until_ready(out)

    assert out.shape == (2, cfg["out_channels"], 32, 32, 32), out.shape
    assert jnp.all(jnp.isfinite(out))
    print("KERNEL_OK")
</pallas_src>

<mosaic_0001>
module attributes {stable_mosaic.version = 11 : i64} {
  func.func @_fused_mm_kernel(%arg0: i32, %arg1: memref<512x343xf32, #tpu.memory_space<vmem>>, %arg2: memref<343x16xf32, #tpu.memory_space<vmem>>, %arg3: memref<1x16xf32, #tpu.memory_space<vmem>>, %arg4: memref<512x16xf32, #tpu.memory_space<vmem>>) attributes {dimension_semantics = [#tpu.dimension_semantics<parallel>], iteration_bounds = array<i64: 2>, scalar_prefetch = 0 : i64, scratch_operands = 0 : i64, tpu.core_type = #tpu.core_type<tc>, window_params = [{transform_indices = @transform_0, window_bounds = array<i64: 512, 343>}, {pipeline_mode = #tpu.pipeline_mode<synchronous>, transform_indices = @transform_1, window_bounds = array<i64: 343, 16>}, {pipeline_mode = #tpu.pipeline_mode<synchronous>, transform_indices = @transform_2, window_bounds = array<i64: 1, 16>}, {transform_indices = @transform_3, window_bounds = array<i64: 512, 16>}]} {
    %c0 = arith.constant 0 : index
    %c0_0 = arith.constant 0 : index
    %0 = vector.load %arg1[%c0, %c0_0] : memref<512x343xf32, #tpu.memory_space<vmem>>, vector<512x343xf32>
    %c0_1 = arith.constant 0 : index
    %c0_2 = arith.constant 0 : index
    %1 = vector.load %arg2[%c0_1, %c0_2] : memref<343x16xf32, #tpu.memory_space<vmem>>, vector<343x16xf32>
    %cst = arith.constant dense<0.000000e+00> : vector<512x16xf32>
    %2 = tpu.matmul %0, %1, %cst {dimension_numbers = #tpu.dot_dimension_numbers<[1], [0], [0], [1], [0, 0, 1, 1], [], []>} : vector<512x343xf32>, vector<343x16xf32>, vector<512x16xf32> -> vector<512x16xf32>
    %c0_3 = arith.constant 0 : index
    %c0_4 = arith.constant 0 : index
    %3 = vector.load %arg3[%c0_3, %c0_4] : memref<1x16xf32, #tpu.memory_space<vmem>>, vector<1x16xf32>
    %4 = vector.broadcast %3 : vector<1x16xf32> to vector<512x16xf32>
    %5 = arith.addf %2, %4 : vector<512x16xf32>
    %c0_5 = arith.constant 0 : index
    %c0_6 = arith.constant 0 : index
    %6 = vector.load %arg4[%c0_5, %c0_6] : memref<512x16xf32, #tpu.memory_space<vmem>>, vector<512x16xf32>
    tpu.vector_store %arg4[%c0_5, %c0_6], %5 {strides = array<i32>} : memref<512x16xf32, #tpu.memory_space<vmem>>, vector<512x16xf32>,
    return
  }
  func.func @transform_0(%arg0: i32) -> (i32, i32) {
    %c0_i32 = arith.constant 0 : i32
    %c0_i32_0 = arith.constant 0 : i32
    return %arg0, %c0_i32 : i32, i32
  }
  func.func @transform_1(%arg0: i32) -> (i32, i32) {
    %c0_i32 = arith.constant 0 : i32
    %c0_i32_0 = arith.constant 0 : i32
    %c0_i32_1 = arith.constant 0 : i32
    return %c0_i32, %c0_i32_0 : i32, i32
  }
  func.func @transform_2(%arg0: i32) -> (i32, i32) {
    %c0_i32 = arith.constant 0 : i32
    %c0_i32_0 = arith.constant 0 : i32
    %c0_i32_1 = arith.constant 0 : i32
    return %c0_i32, %c0_i32_0 : i32, i32
  }
  func.func @transform_3(%arg0: i32) -> (i32, i32) {
    %c0_i32 = arith.constant 0 : i32
    %c0_i32_0 = arith.constant 0 : i32
    return %arg0, %c0_i32 : i32, i32
  }
}

</mosaic_0001>

<llo_original>
// kernel: tpu_custom_call.1
$region0: #{tpu_custom_call.1}
  #allocation0 [shape = 'u32[]', space=smem, size = 0x4, offset = 0x4, fixed_abs, tag = 'smem constant byte address 0x4 - core index']
  #allocation1 [shape = 'u32[72,128]{1,0:T(1,128)}', space=vmem, size = 0x9000, scoped, tag = 'internal scratch']
  %s0 = inlined_call_operand.vmem [shape: f32[1024,343], index: 0, kind: input, shape index: {}]
  %s1 = inlined_call_operand.vmem [shape: f32[343,16], index: 1, kind: input, shape index: {}]
  %s2 = inlined_call_operand.vmem [shape: f32[1,16], index: 2, kind: input, shape index: {}]
  %s3 = inlined_call_operand.vmem [shape: f32[1024,16], index: 3, kind: output, shape index: {}]
  %s4 = sld [smem:[#allocation0]]
  $region45: #{tpu_custom_call.1} parent=0
    _
  %s6 = ssub.s32 1, %s4
  %s7 = scalar_select 0, %s6, %s4
  loop: start=0, step=1, limit=4
  $region2: #{tpu_custom_call.1} parent=0 // loop_pre_header
    _
  $region3: #{tpu_custom_call.1} parent=0 // loop_header
    %s9 = sphi 0, %s13
    %p10 = scmp.ge.s32.totalorder %s9, 4
    %s19 = sphi 0, %s21
    %s22 = sphi 0, %s19
    %s23 = sphi 0, %s22
    %s39 = sphi 0, %s23
    %s43 = sphi 0, %s43
    %s45 = sphi 0, %s43
    %s46 = sphi 0, %s45
    %s60 = sphi 0, %s46
    %s64 = sphi 0, %s64
    %s66 = sphi 0, %s64
    %s67 = sphi 0, %s66
    %s81 = sphi 0, %s67
    %s87 = sphi 0, %s89
    %s90 = sphi 0, %s87
    %s91 = sphi 0, %s90
    %s107 = sphi 0, %s91
  $region4: #{tpu_custom_call.1} parent=0 // loop_header_branch
    %12 = sbr.rel (%p10) target = $region8
  $region5: #{tpu_custom_call.1} parent=0 // loop_body
    %s14 = ssub.s32 %s9, 1
    %s15 = ssub.s32 %s9, 2
    %s16 = sadd.s32 %s9, 1
    %s17 = ssub.s32 %s9, %s16
    %p18 = scmp.eq.s32.totalorder %s17, 0
    %s20 = sadd.s32 %s19, 1
    %s21 = scalar_select %p18, %s19, %s20
    %p24 = pneg %p18
    %p25 = scmp.eq.s32.totalorder %s9, 1
    %p26 = por %p24, %p25
    %p27 = scmp.ne.s32.totalorder %s19, %s22
    %p28 = scmp.eq.s32.totalorder %s9, 0
    %p29 = por %p27, %p28
    %p30 = scmp.ne.s32.totalorder %s19, %s22
    %p31 = scmp.eq.s32.totalorder %s14, 1
    %p32 = por %p30, %p31
    %p33 = scmp.ne.s32.totalorder %s22, %s23
    %p34 = scmp.eq.s32.totalorder %s14, 0
    %p35 = por %p33, %p34
    %p36 = scmp.ne.s32.totalorder %s22, %s23
    %p37 = scmp.eq.s32.totalorder %s15, 1
    %p38 = por %p36, %p37
    %p40 = scmp.ne.s32.totalorder %s23, %s39
    %p41 = scmp.eq.s32.totalorder %s15, 0
    %p42 = por %p40, %p41
    %s44 = sadd.s32 %s43, 1
    %p47 = scmp.eq.s32.totalorder %s9, 1
    %p48 = scmp.ne.s32.totalorder %s43, %s45
    %p49 = scmp.eq.s32.totalorder %s9, 0
    %p50 = por %p48, %p49
    %p51 = scmp.ne.s32.totalorder %s43, %s45
    %p52 = scmp.eq.s32.totalorder %s14, 1
    %p53 = por %p51, %p52
    %p54 = scmp.ne.s32.totalorder %s45, %s46
    %p55 = scmp.eq.s32.totalorder %s14, 0
    %p56 = por %p54, %p55
    %p57 = scmp.ne.s32.totalorder %s45, %s46
    %p58 = scmp.eq.s32.totalorder %s15, 1
    %p59 = por %p57, %p58
    %p61 = scmp.ne.s32.totalorder %s46, %s60
    %p62 = scmp.eq.s32.totalorder %s15, 0
    %p63 = por %p61, %p62
    %s65 = sadd.s32 %s64, 1
    %p68 = scmp.eq.s32.totalorder %s9, 1
    %p69 = scmp.ne.s32.totalorder %s64, %s66
    %p70 = scmp.eq.s32.totalorder %s9, 0
    %p71 = por %p69, %p70
    %p72 = scmp.ne.s32.totalorder %s64, %s66
    %p73 = scmp.eq.s32.totalorder %s14, 1
    %p74 = por %p72, %p73
    %p75 = scmp.ne.s32.totalorder %s66, %s67
    %p76 = scmp.eq.s32.totalorder %s14, 0
    %p77 = por %p75, %p76
    %p78 = scmp.ne.s32.totalorder %s66, %s67
    %p79 = scmp.eq.s32.totalorder %s15, 1
    %p80 = por %p78, %p79
    %p82 = scmp.ne.s32.totalorder %s67, %s81
    %p83 = scmp.eq.s32.totalorder %s15, 0
    %p84 = por %p82, %p83
    %s85 = ssub.s32 %s9, %s16
    %p86 = scmp.eq.s32.totalorder %s85, 0
    %s88 = sadd.s32 %s87, 1
    %s89 = scalar_select %p86, %s87, %s88
    %p92 = pneg %p86
    %p93 = scmp.eq.s32.totalorder %s9, 1
    %p94 = por %p92, %p93
    %p95 = scmp.ne.s32.totalorder %s87, %s90
    %p96 = scmp.eq.s32.totalorder %s9, 0
    %p97 = por %p95, %p96
    %p98 = scmp.ne.s32.totalorder %s87, %s90
    %p99 = scmp.eq.s32.totalorder %s14, 1
    %p100 = por %p98, %p99
    %p101 = scmp.ne.s32.totalorder %s90, %s91
    %p102 = scmp.eq.s32.totalorder %s14, 0
    %p103 = por %p101, %p102
    %p104 = scmp.ne.s32.totalorder %s90, %s91
    %p105 = scmp.eq.s32.totalorder %s15, 1
    %p106 = por %p104, %p105
    %p108 = scmp.ne.s32.totalorder %s91, %s107
    %p109 = scmp.eq.s32.totalorder %s15, 0
    %p110 = por %p108, %p109
    %p111 = scmp.le.s32.totalorder 1, %s9
    %p112 = scmp.lt.s32.totalorder %s9, 3
    %p113 = pnand %p111, %p112
    %p114 = pneg %p113
    // Predicated region
    $region9: #{tpu_custom_call.1} parent=5 // pred_check
      _
    $region10: #{tpu_custom_call.1} parent=5 // pred_check_branch
      %116 = sbr.rel (%p113) target = $region12
    $region11: #{tpu_custom_call.1} parent=5 // pred_region
      %s117 = ssub.s32 %s9, 1
      // Predicated region
      $region13: #{tpu_custom_call.1} parent=11 // pred_check
        %p118 = pneg %p56
      $region14: #{tpu_custom_call.1} parent=11 // pred_check_branch
        %120 = sbr.rel (%p118) target = $region16
      $region15: #{tpu_custom_call.1} parent=11 // pred_region
        _
      $region16: #{tpu_custom_call.1} parent=11 // pred_fallthru
        _
      // Predicated region
      $region17: #{tpu_custom_call.1} parent=11 // pred_check
        %p121 = pneg %p77
      $region18: #{tpu_custom_call.1} parent=11 // pred_check_branch
        %123 = sbr.rel (%p121) target = $region20
      $region19: #{tpu_custom_call.1} parent=11 // pred_region
        _
      $region20: #{tpu_custom_call.1} parent=11 // pred_fallthru
        _
    $region12: #{tpu_custom_call.1} parent=5 // pred_fallthru
      _
    %p124 = scmp.lt.s32.totalorder %s9, 2
    // Predicated region
    $region21: #{tpu_custom_call.1} parent=5 // pred_check
      %p125 = pneg %p124
    $region22: #{tpu_custom_call.1} parent=5 // pred_check_branch
      %127 = sbr.rel (%p125) target = $region24
    $region23: #{tpu_custom_call.1} parent=5 // pred_region
      // Predicated region
      $region25: #{tpu_custom_call.1} parent=23 // pred_check
        %p128 = pneg %p29
      $region26: #{tpu_custom_call.1} parent=23 // pred_check_branch
        %130 = sbr.rel (%p128) target = $region28
      $region27: #{tpu_custom_call.1} parent=23 // pred_region
        %s131 = smul.u32 64, %s9
        %p132 = scmp.lt.s32.totalorder %s131, 127
        %s133 = scalar_select %p132, %s131, 127
        %s134 = smul.addr %s133, 3
        %s135 = smul.addr %s134, 8
        %s136 = scalar_lea.vmem %s0, %s135
        %s137 = smul.u32 64, %s9
      $region28: #{tpu_custom_call.1} parent=23 // pred_fallthru
        _
    $region24: #{tpu_custom_call.1} parent=5 // pred_fallthru
      _
    %p138 = scmp.le.s32.totalorder 1, %s9
    %p139 = scmp.lt.s32.totalorder %s9, 3
    %p140 = pnand %p138, %p139
    %p141 = pneg %p140
    // Predicated region
    $region29: #{tpu_custom_call.1} parent=5 // pred_check
      _
    $region30: #{tpu_custom_call.1} parent=5 // pred_check_branch
      %143 = sbr.rel (%p140) target = $region32
    $region31: #{tpu_custom_call.1} parent=5 // pred_region
      %s144 = ssub.s32 %s9, 1
      %s145 = smul.u32 64, %s14
      %p146 = scmp.lt.s32.totalorder %s145, 127
      %s147 = scalar_select %p146, %s145, 127
      %s148 = smul.addr %s147, 3
      %s149 = smul.addr %s148, 8
      %s150 = scalar_lea.vmem %s0, %s149
      %p151 = pneg %p35
      %p152 = pneg %p32
      %p153 = pneg %p56
      %p154 = pneg %p53
      %p155 = pneg %p77
      %p156 = pneg %p74
      %p157 = pneg %p103
      %p158 = pneg %p100
      %s159 = smul.u32 64, %s14
      %p160 = scmp.lt.s32.totalorder %s159, 127
      %s161 = scalar_select %p160, %s159, 127
      %s162 = smul.addr %s161, 8
      %s163 = scalar_lea.vmem %s3, %s162
      %s164 = smul.u32 64, %s14
      %p165 = scmp.lt.s32.totalorder %s164, 127
      %s166 = scalar_select %p165, %s164, 127
      %s167 = smul.addr %s166, 3
      %s168 = smul.addr %s167, 8
      %s169 = scalar_lea.vmem %s0, %s168
      %s170 = smul.u32 64, %s14
      %s171 = smul.u32 64, %s14
      %p172 = scmp.lt.s32.totalorder %s171, 127
      %s173 = scalar_select %p172, %s171, 127
      %s174 = smul.addr %s173, 8
      %s175 = scalar_lea.vmem %s3, %s174
      %s176 = smul.u32 64, %s14
      %v177 = vld [vmem:[%s169] sm:$0xff]
      %v178 = vld [vmem:[%s169 + $0x8] sm:$0xff]
      %v179 = vld [vmem:[%s169 + $0x10] sm:$0xff]
      %v180 = vld [vmem:[%s169 + $0x18] sm:$0xff]
      %v181 = vld [vmem:[%s169 + $0x20] sm:$0xff]
      %v182 = vld [vmem:[%s169 + $0x28] sm:$0xff]
      %v183 = vld [vmem:[%s169 + $0x30] sm:$0xff]
      %v184 = vld [vmem:[%s169 + $0x38] sm:$0xff]
      %v185 = vld [vmem:[%s169 + $0x40] sm:$0xff]
      %v186 = vld [vmem:[%s169 + $0x48] sm:$0xff]
      %v187 = vld [vmem:[%s169 + $0x50] sm:$0xff]
      %v188 = vld [vmem:[%s169 + $0x58] sm:$0xff]
      %v189 = vld [vmem:[%s169 + $0x60] sm:$0xff]
      %v190 = vld [vmem:[%s169 + $0x68] sm:$0xff]
      %v191 = vld [vmem:[%s169 + $0x70] sm:$0xff]
      %v192 = vld [vmem:[%s169 + $0x78] sm:$0xff]
      %v193 = vld [vmem:[%s169 + $0x80] sm:$0xff]
      %v194 = vld [vmem:[%s169 + $0x88] sm:$0xff]
      %v195 = vld [vmem:[%s169 + $0x90] sm:$0xff]
      %v196 = vld [vmem:[%s169 + $0x98] sm:$0xff]
      %v197 = vld [vmem:[%s169 + $0xa0] sm:$0xff]
      %v198 = vld [vmem:[%s169 + $0xa8] sm:$0xff]
      %v199 = vld [vmem:[%s169 + $0xb0] sm:$0xff]
      %v200 = vld [vmem:[%s169 + $0xb8] sm:$0xff]
      %v201 = vld [vmem:[%s169 + $0xc0] sm:$0xff]
      %v202 = vld [vmem:[%s169 + $0xc8] sm:$0xff]
      %v203 = vld [vmem:[%s169 + $0xd0] sm:$0xff]
      %v204 = vld [vmem:[%s169 + $0xd8] sm:$0xff]
      %v205 = vld [vmem:[%s169 + $0xe0] sm:$0xff]
      %v206 = vld [vmem:[%s169 + $0xe8] sm:$0xff]
      %v207 = vld [vmem:[%s169 + $0xf0] sm:$0xff]
      %v208 = vld [vmem:[%s169 + $0xf8] sm:$0xff]
      %v209 = vld [vmem:[%s169 + $0x100] sm:$0xff]
      %v210 = vld [vmem:[%s169 + $0x108] sm:$0xff]
      %v211 = vld [vmem:[%s169 + $0x110] sm:$0xff]
      %v212 = vld [vmem:[%s169 + $0x118] sm:$0xff]
      %v213 = vld [vmem:[%s169 + $0x120] sm:$0xff]
      %v214 = vld [vmem:[%s169 + $0x128] sm:$0xff]
      %v215 = vld [vmem:[%s169 + $0x130] sm:$0xff]
      %v216 = vld [vmem:[%s169 + $0x138] sm:$0xff]
      %v217 = vld [vmem:[%s169 + $0x140] sm:$0xff]
      %v218 = vld [vmem:[%s169 + $0x148] sm:$0xff]
      %v219 = vld [vmem:[%s169 + $0x150] sm:$0xff]
      %v220 = vld [vmem:[%s169 + $0x158] sm:$0xff]
      %v221 = vld [vmem:[%s169 + $0x160] sm:$0xff]
      %v222 = vld [vmem:[%s169 + $0x168] sm:$0xff]
      %v223 = vld [vmem:[%s169 + $0x170] sm:$0xff]
      %v224 = vld [vmem:[%s169 + $0x178] sm:$0xff]
      %v225 = vld [vmem:[%s169 + $0x180] sm:$0xff]
      %v226 = vld [vmem:[%s169 + $0x188] sm:$0xff]
      %v227 = vld [vmem:[%s169 + $0x190] sm:$0xff]
      %v228 = vld [vmem:[%s169 + $0x198] sm:$0xff]
      %v229 = vld [vmem:[%s169 + $0x1a0] sm:$0xff]
      %v230 = vld [vmem:[%s169 + $0x1a8] sm:$0xff]
      %v231 = vld [vmem:[%s169 + $0x1b0] sm:$0xff]
      %v232 = vld [vmem:[%s169 + $0x1b8] sm:$0xff]
      %v233 = vld [vmem:[%s169 + $0x1c0] sm:$0xff]
      %v234 = vld [vmem:[%s169 + $0x1c8] sm:$0xff]
      %v235 = vld [vmem:[%s169 + $0x1d0] sm:$0xff]
      %v236 = vld [vmem:[%s169 + $0x1d8] sm:$0xff]
      %v237 = vld [vmem:[%s169 + $0x1e0] sm:$0xff]
      %v238 = vld [vmem:[%s169 + $0x1e8] sm:$0xff]
      %v239 = vld [vmem:[%s169 + $0x1f0] sm:$0xff]
      %v240 = vld [vmem:[%s169 + $0x1f8] sm:$0xff]
      %v241 = vld [vmem:[%s169 + $0x200] sm:$0xff]
      %v242 = vld [vmem:[%s169 + $0x208] sm:$0xff]
      %v243 = vld [vmem:[%s169 + $0x210] sm:$0xff]
      %v244 = vld [vmem:[%s169 + $0x218] sm:$0xff]
      %v245 = vld [vmem:[%s169 + $0x220] sm:$0xff]
      %v246 = vld [vmem:[%s169 + $0x228] sm:$0xff]
      %v247 = vld [vmem:[%s169 + $0x230] sm:$0xff]
      %v248 = vld [vmem:[%s169 + $0x238] sm:$0xff]
      %v249 = vld [vmem:[%s169 + $0x240] sm:$0xff]
      %v250 = vld [vmem:[%s169 + $0x248] sm:$0xff]
      %v251 = vld [vmem:[%s169 + $0x250] sm:$0xff]
      %v252 = vld [vmem:[%s169 + $0x258] sm:$0xff]
      %v253 = vld [vmem:[%s169 + $0x260] sm:$0xff]
      %v254 = vld [vmem:[%s169 + $0x268] sm:$0xff]
      %v255 = vld [vmem:[%s169 + $0x270] sm:$0xff]
      %v256 = vld [vmem:[%s169 + $0x278] sm:$0xff]
      %v257 = vld [vmem:[%s169 + $0x280] sm:$0xff]
      %v258 = vld [vmem:[%s169 + $0x288] sm:$0xff]
      %v259 = vld [vmem:[%s169 + $0x290] sm:$0xff]
      %v260 = vld [vmem:[%s169 + $0x298] sm:$0xff]
      %v261 = vld [vmem:[%s169 + $0x2a0] sm:$0xff]
      %v262 = vld [vmem:[%s169 + $0x2a8] sm:$0xff]
      %v263 = vld [vmem:[%s169 + $0x2b0] sm:$0xff]
      %v264 = vld [vmem:[%s169 + $0x2b8] sm:$0xff]
      %v265 = vld [vmem:[%s169 + $0x2c0] sm:$0xff]
      %v266 = vld [vmem:[%s169 + $0x2c8] sm:$0xff]
      %v267 = vld [vmem:[%s169 + $0x2d0] sm:$0xff]
      %v268 = vld [vmem:[%s169 + $0x2d8] sm:$0xff]
      %v269 = vld [vmem:[%s169 + $0x2e0] sm:$0xff]
      %v270 = vld [vmem:[%s169 + $0x2e8] sm:$0xff]
      %v271 = vld [vmem:[%s169 + $0x2f0] sm:$0xff]
      %v272 = vld [vmem:[%s169 + $0x2f8] sm:$0xff]
      %v273 = vld [vmem:[%s169 + $0x300] sm:$0xff]
      %v274 = vld [vmem:[%s169 + $0x308] sm:$0xff]
      %v275 = vld [vmem:[%s169 + $0x310] sm:$0xff]
      %v276 = vld [vmem:[%s169 + $0x318] sm:$0xff]
      %v277 = vld [vmem:[%s169 + $0x320] sm:$0xff]
      %v278 = vld [vmem:[%s169 + $0x328] sm:$0xff]
      %v279 = vld [vmem:[%s169 + $0x330] sm:$0xff]
      %v280 = vld [vmem:[%s169 + $0x338] sm:$0xff]
      %v281 = vld [vmem:[%s169 + $0x340] sm:$0xff]
      %v282 = vld [vmem:[%s169 + $0x348] sm:$0xff]
      %v283 = vld [vmem:[%s169 + $0x350] sm:$0xff]
      %v284 = vld [vmem:[%s169 + $0x358] sm:$0xff]
      %v285 = vld [vmem:[%s169 + $0x360] sm:$0xff]
      %v286 = vld [vmem:[%s169 + $0x368] sm:$0xff]
      %v287 = vld [vmem:[%s169 + $0x370] sm:$0xff]
      %v288 = vld [vmem:[%s169 + $0x378] sm:$0xff]
      %v289 = vld [vmem:[%s169 + $0x380] sm:$0xff]
      %v290 = vld [vmem:[%s169 + $0x388] sm:$0xff]
      %v291 = vld [vmem:[%s169 + $0x390] sm:$0xff]
      %v292 = vld [vmem:[%s169 + $0x398] sm:$0xff]
      %v293 = vld [vmem:[%s169 + $0x3a0] sm:$0xff]
      %v294 = vld [vmem:[%s169 + $0x3a8] sm:$0xff]
      %v295 = vld [vmem:[%s169 + $0x3b0] sm:$0xff]
      %v296 = vld [vmem:[%s169 + $0x3b8] sm:$0xff]
      %v297 = vld [vmem:[%s169 + $0x3c0] sm:$0xff]
      %v298 = vld [vmem:[%s169 + $0x3c8] sm:$0xff]
      %v299 = vld [vmem:[%s169 + $0x3d0] sm:$0xff]
      %v300 = vld [vmem:[%s169 + $0x3d8] sm:$0xff]
      %v301 = vld [vmem:[%s169 + $0x3e0] sm:$0xff]
      %v302 = vld [vmem:[%s169 + $0x3e8] sm:$0xff]
      %v303 = vld [vmem:[%s169 + $0x3f0] sm:$0xff]
      %v304 = vld [vmem:[%s169 + $0x3f8] sm:$0xff]
      %v305 = vld [vmem:[%s169 + $0x400] sm:$0xff]
      %v306 = vld [vmem:[%s169 + $0x408] sm:$0xff]
      %v307 = vld [vmem:[%s169 + $0x410] sm:$0xff]
      %v308 = vld [vmem:[%s169 + $0x418] sm:$0xff]
      %v309 = vld [vmem:[%s169 + $0x420] sm:$0xff]
      %v310 = vld [vmem:[%s169 + $0x428] sm:$0xff]
      %v311 = vld [vmem:[%s169 + $0x430] sm:$0xff]
      %v312 = vld [vmem:[%s169 + $0x438] sm:$0xff]
      %v313 = vld [vmem:[%s169 + $0x440] sm:$0xff]
      %v314 = vld [vmem:[%s169 + $0x448] sm:$0xff]
      %v315 = vld [vmem:[%s169 + $0x450] sm:$0xff]
      %v316 = vld [vmem:[%s169 + $0x458] sm:$0xff]
      %v317 = vld [vmem:[%s169 + $0x460] sm:$0xff]
      %v318 = vld [vmem:[%s169 + $0x468] sm:$0xff]
      %v319 = vld [vmem:[%s169 + $0x470] sm:$0xff]
      %v320 = vld [vmem:[%s169 + $0x478] sm:$0xff]
      %v321 = vld [vmem:[%s169 + $0x480] sm:$0xff]
      %v322 = vld [vmem:[%s169 + $0x488] sm:$0xff]
      %v323 = vld [vmem:[%s169 + $0x490] sm:$0xff]
      %v324 = vld [vmem:[%s169 + $0x498] sm:$0xff]
      %v325 = vld [vmem:[%s169 + $0x4a0] sm:$0xff]
      %v326 = vld [vmem:[%s169 + $0x4a8] sm:$0xff]
      %v327 = vld [vmem:[%s169 + $0x4b0] sm:$0xff]
      %v328 = vld [vmem:[%s169 + $0x4b8] sm:$0xff]
      %v329 = vld [vmem:[%s169 + $0x4c0] sm:$0xff]
      %v330 = vld [vmem:[%s169 + $0x4c8] sm:$0xff]
      %v331 = vld [vmem:[%s169 + $0x4d0] sm:$0xff]
      %v332 = vld [vmem:[%s169 + $0x4d8] sm:$0xff]
      %v333 = vld [vmem:[%s169 + $0x4e0] sm:$0xff]
      %v334 = vld [vmem:[%s169 + $0x4e8] sm:$0xff]
      %v335 = vld [vmem:[%s169 + $0x4f0] sm:$0xff]
      %v336 = vld [vmem:[%s169 + $0x4f8] sm:$0xff]
      %v337 = vld [vmem:[%s169 + $0x500] sm:$0xff]
      %v338 = vld [vmem:[%s169 + $0x508] sm:$0xff]
      %v339 = vld [vmem:[%s169 + $0x510] sm:$0xff]
      %v340 = vld [vmem:[%s169 + $0x518] sm:$0xff]
      %v341 = vld [vmem:[%s169 + $0x520] sm:$0xff]
      %v342 = vld [vmem:[%s169 + $0x528] sm:$0xff]
      %v343 = vld [vmem:[%s169 + $0x530] sm:$0xff]
      %v344 = vld [vmem:[%s169 + $0x538] sm:$0xff]
      %v345 = vld [vmem:[%s169 + $0x540] sm:$0xff]
      %v346 = vld [vmem:[%s169 + $0x548] sm:$0xff]
      %v347 = vld [vmem:[%s169 + $0x550] sm:$0xff]
      %v348 = vld [vmem:[%s169 + $0x558] sm:$0xff]
      %v349 = vld [vmem:[%s169 + $0x560] sm:$0xff]
      %v350 = vld [vmem:[%s169 + $0x568] sm:$0xff]
      %v351 = vld [vmem:[%s169 + $0x570] sm:$0xff]
      %v352 = vld [vmem:[%s169 + $0x578] sm:$0xff]
      %v353 = vld [vmem:[%s169 + $0x580] sm:$0xff]
      %v354 = vld [vmem:[%s169 + $0x588] sm:$0xff]
      %v355 = vld [vmem:[%s169 + $0x590] sm:$0xff]
      %v356 = vld [vmem:[%s169 + $0x598] sm:$0xff]
      %v357 = vld [vmem:[%s169 + $0x5a0] sm:$0xff]
      %v358 = vld [vmem:[%s169 + $0x5a8] sm:$0xff]
      %v359 = vld [vmem:[%s169 + $0x5b0] sm:$0xff]
      %v360 = vld [vmem:[%s169 + $0x5b8] sm:$0xff]
      %v361 = vld [vmem:[%s169 + $0x5c0] sm:$0xff]
      %v362 = vld [vmem:[%s169 + $0x5c8] sm:$0xff]
      %v363 = vld [vmem:[%s169 + $0x5d0] sm:$0xff]
      %v364 = vld [vmem:[%s169 + $0x5d8] sm:$0xff]
      %v365 = vld [vmem:[%s169 + $0x5e0] sm:$0xff]
      %v366 = vld [vmem:[%s169 + $0x5e8] sm:$0xff]
      %v367 = vld [vmem:[%s169 + $0x5f0] sm:$0xff]
      %v368 = vld [vmem:[%s169 + $0x5f8] sm:$0xff]
      %v369 = vld [vmem:[%s1] sm:$0xff]
      %v370 = vld [vmem:[%s1 + $0x8] sm:$0xff]
      %v371 = vld [vmem:[%s1 + $0x10] sm:$0xff]
      %v372 = vld [vmem:[%s1 + $0x18] sm:$0xff]
      %v373 = vld [vmem:[%s1 + $0x20] sm:$0xff]
      %v374 = vld [vmem:[%s1 + $0x28] sm:$0xff]
      %v375 = vld [vmem:[%s1 + $0x30] sm:$0xff]
      %v376 = vld [vmem:[%s1 + $0x38] sm:$0xff]
      %v377 = vld [vmem:[%s1 + $0x40] sm:$0xff]
      %v378 = vld [vmem:[%s1 + $0x48] sm:$0xff]
      %v379 = vld [vmem:[%s1 + $0x50] sm:$0xff]
      %v380 = vld [vmem:[%s1 + $0x58] sm:$0xff]
      %v381 = vld [vmem:[%s1 + $0x60] sm:$0xff]
      %v382 = vld [vmem:[%s1 + $0x68] sm:$0xff]
      %v383 = vld [vmem:[%s1 + $0x70] sm:$0xff]
      %v384 = vld [vmem:[%s1 + $0x78] sm:$0xff]
      %v385 = vld [vmem:[%s1 + $0x80] sm:$0xff]
      %v386 = vld [vmem:[%s1 + $0x88] sm:$0xff]
      %v387 = vld [vmem:[%s1 + $0x90] sm:$0xff]
      %v388 = vld [vmem:[%s1 + $0x98] sm:$0xff]
      %v389 = vld [vmem:[%s1 + $0xa0] sm:$0xff]
      %v390 = vld [vmem:[%s1 + $0xa8] sm:$0xff]
      %v391 = vld [vmem:[%s1 + $0xb0] sm:$0xff]
      %v392 = vld [vmem:[%s1 + $0xb8] sm:$0xff]
      %v393 = vld [vmem:[%s1 + $0xc0] sm:$0xff]
      %v394 = vld [vmem:[%s1 + $0xc8] sm:$0xff]
      %v395 = vld [vmem:[%s1 + $0xd0] sm:$0xff]
      %v396 = vld [vmem:[%s1 + $0xd8] sm:$0xff]
      %v397 = vld [vmem:[%s1 + $0xe0] sm:$0xff]
      %v398 = vld [vmem:[%s1 + $0xe8] sm:$0xff]
      %v399 = vld [vmem:[%s1 + $0xf0] sm:$0xff]
      %v400 = vld [vmem:[%s1 + $0xf8] sm:$0xff]
      %v401 = vld [vmem:[%s1 + $0x100] sm:$0xff]
      %v402 = vld [vmem:[%s1 + $0x108] sm:$0xff]
      %v403 = vld [vmem:[%s1 + $0x110] sm:$0xff]
      %v404 = vld [vmem:[%s1 + $0x118] sm:$0xff]
      %v405 = vld [vmem:[%s1 + $0x120] sm:$0xff]
      %v406 = vld [vmem:[%s1 + $0x128] sm:$0xff]
      %v407 = vld [vmem:[%s1 + $0x130] sm:$0xff]
      %v408 = vld [vmem:[%s1 + $0x138] sm:$0xff]
      %v409 = vld [vmem:[%s1 + $0x140] sm:$0xff]
      %v410 = vld [vmem:[%s1 + $0x148] sm:$0xff]
      %v411 = vld [vmem:[%s1 + $0x150] sm:$0x7f]
      %v412 = vld [vmem:[%s2] sm:$0x1]
      %v414 = vperm.slane %v412, 0
      %vm416 = vcmask 711680
      %v418 = vsel %vm416, %v179, 0
      %v421 = vsel %vm416, %v182, 0
      %v424 = vsel %vm416, %v185, 0
      %v427 = vsel %vm416, %v188, 0
      %v430 = vsel %vm416, %v191, 0
      %v433 = vsel %vm416, %v194, 0
      %v436 = vsel %vm416, %v197, 0
      %v439 = vsel %vm416, %v200, 0
      %v442 = vsel %vm416, %v203, 0
      %v445 = vsel %vm416, %v206, 0
      %v448 = vsel %vm416, %v209, 0
      %v451 = vsel %vm416, %v212, 0
      %v454 = vsel %vm416, %v215, 0
      %v457 = vsel %vm416, %v218, 0
      %v460 = vsel %vm416, %v221, 0
      %v463 = vsel %vm416, %v224, 0
      %v466 = vsel %vm416, %v227, 0
      %v469 = vsel %vm416, %v230, 0
      %v472 = vsel %vm416, %v233, 0
      %v475 = vsel %vm416, %v236, 0
      %v478 = vsel %vm416, %v239, 0
      %v481 = vsel %vm416, %v242, 0
      %v484 = vsel %vm416, %v245, 0
      %v487 = vsel %vm416, %v248, 0
      %v490 = vsel %vm416, %v251, 0
      %v493 = vsel %vm416, %v254, 0
      %v496 = vsel %vm416, %v257, 0
      %v499 = vsel %vm416, %v260, 0
      %v502 = vsel %vm416, %v263, 0
      %v505 = vsel %vm416, %v266, 0
      %v508 = vsel %vm416, %v269, 0
      %v511 = vsel %vm416, %v272, 0
      %v514 = vsel %vm416, %v275, 0
      %v517 = vsel %vm416, %v278, 0
      %v520 = vsel %vm416, %v281, 0
      %v523 = vsel %vm416, %v284, 0
      %v526 = vsel %vm416, %v287, 0
      %v529 = vsel %vm416, %v290, 0
      %v532 = vsel %vm416, %v293, 0
      %v535 = vsel %vm416, %v296, 0
      %v538 = vsel %vm416, %v299, 0
      %v541 = vsel %vm416, %v302, 0
      %v544 = vsel %vm416, %v305, 0
      %v547 = vsel %vm416, %v308, 0
      %v550 = vsel %vm416, %v311, 0
      %v553 = vsel %vm416, %v314, 0
      %v556 = vsel %vm416, %v317, 0
      %v559 = vsel %vm416, %v320, 0
      %v562 = vsel %vm416, %v323, 0
      %v565 = vsel %vm416, %v326, 0
      %v568 = vsel %vm416, %v329, 0
      %v571 = vsel %vm416, %v332, 0
      %v574 = vsel %vm416, %v335, 0
      %v577 = vsel %vm416, %v338, 0
      %v580 = vsel %vm416, %v341, 0
      %v583 = vsel %vm416, %v344, 0
      %v586 = vsel %vm416, %v347, 0
      %v589 = vsel %vm416, %v350, 0
      %v592 = vsel %vm416, %v353, 0
      %v595 = vsel %vm416, %v356, 0
      %v598 = vsel %vm416, %v359, 0
      %v601 = vsel %vm416, %v362, 0
      %v604 = vsel %vm416, %v365, 0
      %v607 = vsel %vm416, %v368, 0
      %vm609 = vcmask 1046528
      %v611 = vsel %vm609, %v411, 0
      %613 = vmatpush.msra.mxu0 %v384
      %614 = vmatpush.msra.mxu0 %v383
      %615 = vmatpush.msra.mxu0 %v382
      %616 = vmatpush.msra.mxu0 %v381
      %617 = vmatpush.msra.mxu0 %v380
      %618 = vmatpush.msra.mxu0 %v379
      %619 = vmatpush.msra.mxu0 %v378
      %620 = vmatpush.msra.mxu0 %v377
      %621 = vmatpush.msra.mxu0 %v376
      %622 = vmatpush.msra.mxu0 %v375
      %623 = vmatpush.msra.mxu0 %v374
      %624 = vmatpush.msra.mxu0 %v373
      %625 = vmatpush.msra.mxu0 %v372
      %626 = vmatpush.msra.mxu0 %v371
      %627 = vmatpush.msra.mxu0 %v370
      %628 = vmatpush.msra.mxu0 %v369
      %629 = vmatmul.f32.gmra.mxu0 %v177
      %v630 = vpop.f32.mrf.mxu0
      %v631 = vadd.f32 %v414, %v630
      %632 = vmatmul.f32.gmra.mxu0 %v180
      %v633 = vpop.f32.mrf.mxu0
      %v634 = vadd.f32 %v414, %v633
      %635 = vmatmul.f32.gmra.mxu0 %v183
      %v636 = vpop.f32.mrf.mxu0
      %v637 = vadd.f32 %v414, %v636
      %638 = vmatmul.f32.gmra.mxu0 %v186
      %v639 = vpop.f32.mrf.mxu0
      %v640 = vadd.f32 %v414, %v639
      %641 = vmatmul.f32.gmra.mxu0 %v189
      %v642 = vpop.f32.mrf.mxu0
      %v643 = vadd.f32 %v414, %v642
      %644 = vmatmul.f32.gmra.mxu0 %v192
      %v645 = vpop.f32.mrf.mxu0
      %v646 = vadd.f32 %v414, %v645
      %647 = vmatmul.f32.gmra.mxu0 %v195
      %v648 = vpop.f32.mrf.mxu0
      %v649 = vadd.f32 %v414, %v648
      %650 = vmatmul.f32.gmra.mxu0 %v198
      %v651 = vpop.f32.mrf.mxu0
      %v652 = vadd.f32 %v414, %v651
      %653 = vmatmul.f32.gmra.mxu0 %v201
      %v654 = vpop.f32.mrf.mxu0
      %v655 = vadd.f32 %v414, %v654
      %656 = vmatmul.f32.gmra.mxu0 %v204
      %v657 = vpop.f32.mrf.mxu0
      %v658 = vadd.f32 %v414, %v657
      %659 = vmatmul.f32.gmra.mxu0 %v207
      %v660 = vpop.f32.mrf.mxu0
      %v661 = vadd.f32 %v414, %v660
      %662 = vmatmul.f32.gmra.mxu0 %v210
      %v663 = vpop.f32.mrf.mxu0
      %v664 = vadd.f32 %v414, %v663
      %665 = vmatmul.f32.gmra.mxu0 %v213
      %v666 = vpop.f32.mrf.mxu0
      %v667 = vadd.f32 %v414, %v666
      %668 = vmatmul.f32.gmra.mxu0 %v216
      %v669 = vpop.f32.mrf.mxu0
      %v670 = vadd.f32 %v414, %v669
      %671 = vmatmul.f32.gmra.mxu0 %v219
      %v672 = vpop.f32.mrf.mxu0
      %v673 = vadd.f32 %v414, %v672
      %674 = vmatmul.f32.gmra.mxu0 %v222
      %v675 = vpop.f32.mrf.mxu0
      %v676 = vadd.f32 %v414, %v675
      %677 = vmatmul.f32.gmra.mxu0 %v225
      %v678 = vpop.f32.mrf.mxu0
      %v679 = vadd.f32 %v414, %v678
      %680 = vmatmul.f32.gmra.mxu0 %v228
      %v681 = vpop.f32.mrf.mxu0
      %v682 = vadd.f32 %v414, %v681
      %683 = vmatmul.f32.gmra.mxu0 %v231
      %v684 = vpop.f32.mrf.mxu0
      %v685 = vadd.f32 %v414, %v684
      %686 = vmatmul.f32.gmra.mxu0 %v234
      %v687 = vpop.f32.mrf.mxu0
      %v688 = vadd.f32 %v414, %v687
      %689 = vmatmul.f32.gmra.mxu0 %v237
      %v690 = vpop.f32.mrf.mxu0
      %v691 = vadd.f32 %v414, %v690
      %692 = vmatmul.f32.gmra.mxu0 %v240
      %v693 = vpop.f32.mrf.mxu0
      %v694 = vadd.f32 %v414, %v693
      %695 = vmatmul.f32.gmra.mxu0 %v243
      %v696 = vpop.f32.mrf.mxu0
      %v697 = vadd.f32 %v414, %v696
      %698 = vmatmul.f32.gmra.mxu0 %v246
      %v699 = vpop.f32.mrf.mxu0
      %v700 = vadd.f32 %v414, %v699
      %701 = vmatmul.f32.gmra.mxu0 %v249
      %v702 = vpop.f32.mrf.mxu0
      %v703 = vadd.f32 %v414, %v702
      %704 = vmatmul.f32.gmra.mxu0 %v252
      %v705 = vpop.f32.mrf.mxu0
      %v706 = vadd.f32 %v414, %v705
      %707 = vmatmul.f32.gmra.mxu0 %v255
      %v708 = vpop.f32.mrf.mxu0
      %v709 = vadd.f32 %v414, %v708
      %710 = vmatmul.f32.gmra.mxu0 %v258
      %v711 = vpop.f32.mrf.mxu0
      %v712 = vadd.f32 %v414, %v711
      %713 = vmatmul.f32.gmra.mxu0 %v261
      %v714 = vpop.f32.mrf.mxu0
      %v715 = vadd.f32 %v414, %v714
      %716 = vmatmul.f32.gmra.mxu0 %v264
      %v717 = vpop.f32.mrf.mxu0
      %v718 = vadd.f32 %v414, %v717
      %719 = vmatmul.f32.gmra.mxu0 %v267
      %v720 = vpop.f32.mrf.mxu0
      %v721 = vadd.f32 %v414, %v720
      %722 = vmatmul.f32.gmra.mxu0 %v270
      %v723 = vpop.f32.mrf.mxu0
      %v724 = vadd.f32 %v414, %v723
      %725 = vmatmul.f32.gmra.mxu0 %v273
      %v726 = vpop.f32.mrf.mxu0
      %v727 = vadd.f32 %v414, %v726
      %728 = vmatmul.f32.gmra.mxu0 %v276
      %v729 = vpop.f32.mrf.mxu0
      %v730 = vadd.f32 %v414, %v729
      %731 = vmatmul.f32.gmra.mxu0 %v279
      %v732 = vpop.f32.mrf.mxu0
      %v733 = vadd.f32 %v414, %v732
      %734 = vmatmul.f32.gmra.mxu0 %v282
      %v735 = vpop.f32.mrf.mxu0
      %v736 = vadd.f32 %v414, %v735
      %737 = vmatmul.f32.gmra.mxu0 %v285
      %v738 = vpop.f32.mrf.mxu0
      %v739 = vadd.f32 %v414, %v738
      %740 = vmatmul.f32.gmra.mxu0 %v288
      %v741 = vpop.f32.mrf.mxu0
      %v742 = vadd.f32 %v414, %v741
      %743 = vmatmul.f32.gmra.mxu0 %v291
      %v744 = vpop.f32.mrf.mxu0
      %v745 = vadd.f32 %v414, %v744
      %746 = vmatmul.f32.gmra.mxu0 %v294
      %v747 = vpop.f32.mrf.mxu0
      %v748 = vadd.f32 %v414, %v747
      %749 = vmatmul.f32.gmra.mxu0 %v297
      %v750 = vpop.f32.mrf.mxu0
      %v751 = vadd.f32 %v414, %v750
      %752 = vmatmul.f32.gmra.mxu0 %v300
      %v753 = vpop.f32.mrf.mxu0
      %v754 = vadd.f32 %v414, %v753
      %755 = vmatmul.f32.gmra.mxu0 %v303
      %v756 = vpop.f32.mrf.mxu0
      %v757 = vadd.f32 %v414, %v756
      %758 = vmatmul.f32.gmra.mxu0 %v306
      %v759 = vpop.f32.mrf.mxu0
      %v760 = vadd.f32 %v414, %v759
      %761 = vmatmul.f32.gmra.mxu0 %v309
      %v762 = vpop.f32.mrf.mxu0
      %v763 = vadd.f32 %v414, %v762
      %764 = vmatmul.f32.gmra.mxu0 %v312
      %v765 = vpop.f32.mrf.mxu0
      %v766 = vadd.f32 %v414, %v765
      %767 = vmatmul.f32.gmra.mxu0 %v315
      %v768 = vpop.f32.mrf.mxu0
      %v769 = vadd.f32 %v414, %v768
      %770 = vmatmul.f32.gmra.mxu0 %v318
      %v771 = vpop.f32.mrf.mxu0
      %v772 = vadd.f32 %v414, %v771
      %773 = vmatmul.f32.gmra.mxu0 %v321
      %v774 = vpop.f32.mrf.mxu0
      %v775 = vadd.f32 %v414, %v774
      %776 = vmatmul.f32.gmra.mxu0 %v324
      %v777 = vpop.f32.mrf.mxu0
      %v778 = vadd.f32 %v414, %v777
      %779 = vmatmul.f32.gmra.mxu0 %v327
      %v780 = vpop.f32.mrf.mxu0
      %v781 = vadd.f32 %v414, %v780
      %782 = vmatmul.f32.gmra.mxu0 %v330
      %v783 = vpop.f32.mrf.mxu0
      %v784 = vadd.f32 %v414, %v783
      %785 = vmatmul.f32.gmra.mxu0 %v333
      %v786 = vpop.f32.mrf.mxu0
      %v787 = vadd.f32 %v414, %v786
      %788 = vmatmul.f32.gmra.mxu0 %v336
      %v789 = vpop.f32.mrf.mxu0
      %v790 = vadd.f32 %v414, %v789
      %791 = vmatmul.f32.gmra.mxu0 %v339
      %v792 = vpop.f32.mrf.mxu0
      %v793 = vadd.f32 %v414, %v792
      %794 = vmatmul.f32.gmra.mxu0 %v342
      %v795 = vpop.f32.mrf.mxu0
      %v796 = vadd.f32 %v414, %v795
      %797 = vmatmul.f32.gmra.mxu0 %v345
      %v798 = vpop.f32.mrf.mxu0
      %v799 = vadd.f32 %v414, %v798
      %800 = vmatmul.f32.gmra.mxu0 %v348
      %v801 = vpop.f32.mrf.mxu0
      %v802 = vadd.f32 %v414, %v801
      %803 = vmatmul.f32.gmra.mxu0 %v351
      %v804 = vpop.f32.mrf.mxu0
      %v805 = vadd.f32 %v414, %v804
      %806 = vmatmul.f32.gmra.mxu0 %v354
      %v807 = vpop.f32.mrf.mxu0
      %v808 = vadd.f32 %v414, %v807
      %809 = vmatmul.f32.gmra.mxu0 %v357
      %v810 = vpop.f32.mrf.mxu0
      %v811 = vadd.f32 %v414, %v810
      %812 = vmatmul.f32.gmra.mxu0 %v360
      %v813 = vpop.f32.mrf.mxu0
      %v814 = vadd.f32 %v414, %v813
      %815 = vmatmul.f32.gmra.mxu0 %v363
      %v816 = vpop.f32.mrf.mxu0
      %v817 = vadd.f32 %v414, %v816
      %818 = vmatmul.f32.gmra.mxu0 %v366
      %v819 = vpop.f32.mrf.mxu0
      %v820 = vadd.f32 %v414, %v819
      %821 = vdwg.mxu0
      %822 = vmatpush.msra.mxu0 %v400
      %823 = vmatpush.msra.mxu0 %v399
      %824 = vmatpush.msra.mxu0 %v398
      %825 = vmatpush.msra.mxu0 %v397
      %826 = vmatpush.msra.mxu0 %v396
      %827 = vmatpush.msra.mxu0 %v395
      %828 = vmatpush.msra.mxu0 %v394
      %829 = vmatpush.msra.mxu0 %v393
      %830 = vmatpush.msra.mxu0 %v392
      %831 = vmatpush.msra.mxu0 %v391
      %832 = vmatpush.msra.mxu0 %v390
      %833 = vmatpush.msra.mxu0 %v389
      %834 = vmatpush.msra.mxu0 %v388
      %835 = vmatpush.msra.mxu0 %v387
      %836 = vmatpush.msra.mxu0 %v386
      %837 = vmatpush.msra.mxu0 %v385
      %838 = vmatmul.f32.gmra.mxu0 %v178
      %v839 = vpop.f32.mrf.mxu0
      %v840 = vadd.f32 %v631, %v839
      %841 = vmatmul.f32.gmra.mxu0 %v181
      %v842 = vpop.f32.mrf.mxu0
      %v843 = vadd.f32 %v634, %v842
      %844 = vmatmul.f32.gmra.mxu0 %v184
      %v845 = vpop.f32.mrf.mxu0
      %v846 = vadd.f32 %v637, %v845
      %847 = vmatmul.f32.gmra.mxu0 %v187
      %v848 = vpop.f32.mrf.mxu0
      %v849 = vadd.f32 %v640, %v848
      %850 = vmatmul.f32.gmra.mxu0 %v190
      %v851 = vpop.f32.mrf.mxu0
      %v852 = vadd.f32 %v643, %v851
      %853 = vmatmul.f32.gmra.mxu0 %v193
      %v854 = vpop.f32.mrf.mxu0
      %v855 = vadd.f32 %v646, %v854
      %856 = vmatmul.f32.gmra.mxu0 %v196
      %v857 = vpop.f32.mrf.mxu0
      %v858 = vadd.f32 %v649, %v857
      %859 = vmatmul.f32.gmra.mxu0 %v199
      %v860 = vpop.f32.mrf.mxu0
      %v861 = vadd.f32 %v652, %v860
      %862 = vmatmul.f32.gmra.mxu0 %v202
      %v863 = vpop.f32.mrf.mxu0
      %v864 = vadd.f32 %v655, %v863
      %865 = vmatmul.f32.gmra.mxu0 %v205
      %v866 = vpop.f32.mrf.mxu0
      %v867 = vadd.f32 %v658, %v866
      %868 = vmatmul.f32.gmra.mxu0 %v208
      %v869 = vpop.f32.mrf.mxu0
      %v870 = vadd.f32 %v661, %v869
      %871 = vmatmul.f32.gmra.mxu0 %v211
      %v872 = vpop.f32.mrf.mxu0
      %v873 = vadd.f32 %v664, %v872
      %874 = vmatmul.f32.gmra.mxu0 %v214
      %v875 = vpop.f32.mrf.mxu0
      %v876 = vadd.f32 %v667, %v875
      %877 = vmatmul.f32.gmra.mxu0 %v217
      %v878 = vpop.f32.mrf.mxu0
      %v879 = vadd.f32 %v670, %v878
      %880 = vmatmul.f32.gmra.mxu0 %v220
      %v881 = vpop.f32.mrf.mxu0
      %v882 = vadd.f32 %v673, %v881
      %883 = vmatmul.f32.gmra.mxu0 %v223
      %v884 = vpop.f32.mrf.mxu0
      %v885 = vadd.f32 %v676, %v884
      %886 = vmatmul.f32.gmra.mxu0 %v226
      %v887 = vpop.f32.mrf.mxu0
      %v888 = vadd.f32 %v679, %v887
      %889 = vmatmul.f32.gmra.mxu0 %v229
      %v890 = vpop.f32.mrf.mxu0
      %v891 = vadd.f32 %v682, %v890
      %892 = vmatmul.f32.gmra.mxu0 %v232
      %v893 = vpop.f32.mrf.mxu0
      %v894 = vadd.f32 %v685, %v893
      %895 = vmatmul.f32.gmra.mxu0 %v235
      %v896 = vpop.f32.mrf.mxu0
      %v897 = vadd.f32 %v688, %v896
      %898 = vmatmul.f32.gmra.mxu0 %v238
      %v899 = vpop.f32.mrf.mxu0
      %v900 = vadd.f32 %v691, %v899
      %901 = vmatmul.f32.gmra.mxu0 %v241
      %v902 = vpop.f32.mrf.mxu0
      %v903 = vadd.f32 %v694, %v902
      %904 = vmatmul.f32.gmra.mxu0 %v244
      %v905 = vpop.f32.mrf.mxu0
      %v906 = vadd.f32 %v697, %v905
      %907 = vmatmul.f32.gmra.mxu0 %v247
      %v908 = vpop.f32.mrf.mxu0
      %v909 = vadd.f32 %v700, %v908
      %910 = vmatmul.f32.gmra.mxu0 %v250
      %v911 = vpop.f32.mrf.mxu0
      %v912 = vadd.f32 %v703, %v911
      %913 = vmatmul.f32.gmra.mxu0 %v253
      %v914 = vpop.f32.mrf.mxu0
      %v915 = vadd.f32 %v706, %v914
      %916 = vmatmul.f32.gmra.mxu0 %v256
      %v917 = vpop.f32.mrf.mxu0
      %v918 = vadd.f32 %v709, %v917
      %919 = vmatmul.f32.gmra.mxu0 %v259
      %v920 = vpop.f32.mrf.mxu0
      %v921 = vadd.f32 %v712, %v920
      %922 = vmatmul.f32.gmra.mxu0 %v262
      %v923 = vpop.f32.mrf.mxu0
      %v924 = vadd.f32 %v715, %v923
      %925 = vmatmul.f32.gmra.mxu0 %v265
      %v926 = vpop.f32.mrf.mxu0
      %v927 = vadd.f32 %v718, %v926
      %928 = vmatmul.f32.gmra.mxu0 %v268
      %v929 = vpop.f32.mrf.mxu0
      %v930 = vadd.f32 %v721, %v929
      %931 = vmatmul.f32.gmra.mxu0 %v271
      %v932 = vpop.f32.mrf.mxu0
      %v933 = vadd.f32 %v724, %v932
      %934 = vmatmul.f32.gmra.mxu0 %v274
      %v935 = vpop.f32.mrf.mxu0
      %v936 = vadd.f32 %v727, %v935
      %937 = vmatmul.f32.gmra.mxu0 %v277
      %v938 = vpop.f32.mrf.mxu0
      %v939 = vadd.f32 %v730, %v938
      %940 = vmatmul.f32.gmra.mxu0 %v280
      %v941 = vpop.f32.mrf.mxu0
      %v942 = vadd.f32 %v733, %v941
      %943 = vmatmul.f32.gmra.mxu0 %v283
      %v944 = vpop.f32.mrf.mxu0
      %v945 = vadd.f32 %v736, %v944
      %946 = vmatmul.f32.gmra.mxu0 %v286
      %v947 = vpop.f32.mrf.mxu0
      %v948 = vadd.f32 %v739, %v947
      %949 = vmatmul.f32.gmra.mxu0 %v289
      %v950 = vpop.f32.mrf.mxu0
      %v951 = vadd.f32 %v742, %v950
      %952 = vmatmul.f32.gmra.mxu0 %v292
      %v953 = vpop.f32.mrf.mxu0
      %v954 = vadd.f32 %v745, %v953
      %955 = vmatmul.f32.gmra.mxu0 %v295
      %v956 = vpop.f32.mrf.mxu0
      %v957 = vadd.f32 %v748, %v956
      %958 = vmatmul.f32.gmra.mxu0 %v298
      %v959 = vpop.f32.mrf.mxu0
      %v960 = vadd.f32 %v751, %v959
      %961 = vmatmul.f32.gmra.mxu0 %v301
      %v962 = vpop.f32.mrf.mxu0
      %v963 = vadd.f32 %v754, %v962
      %964 = vmatmul.f32.gmra.mxu0 %v304
      %v965 = vpop.f32.mrf.mxu0
      %v966 = vadd.f32 %v757, %v965
      %967 = vmatmul.f32.gmra.mxu0 %v307
      %v968 = vpop.f32.mrf.mxu0
      %v969 = vadd.f32 %v760, %v968
      %970 = vmatmul.f32.gmra.mxu0 %v310
      %v971 = vpop.f32.mrf.mxu0
      %v972 = vadd.f32 %v763, %v971
      %973 = vmatmul.f32.gmra.mxu0 %v313
      %v974 = vpop.f32.mrf.mxu0
      %v975 = vadd.f32 %v766, %v974
      %976 = vmatmul.f32.gmra.mxu0 %v316
      %v977 = vpop.f32.mrf.mxu0
      %v978 = vadd.f32 %v769, %v977
      %979 = vmatmul.f32.gmra.mxu0 %v319
      %v980 = vpop.f32.mrf.mxu0
      %v981 = vadd.f32 %v772, %v980
      %982 = vmatmul.f32.gmra.mxu0 %v322
      %v983 = vpop.f32.mrf.mxu0
      %v984 = vadd.f32 %v775, %v983
      %985 = vmatmul.f32.gmra.mxu0 %v325
      %v986 = vpop.f32.mrf.mxu0
      %v987 = vadd.f32 %v778, %v986
      %988 = vmatmul.f32.gmra.mxu0 %v328
      %v989 = vpop.f32.mrf.mxu0
      %v990 = vadd.f32 %v781, %v989
      %991 = vmatmul.f32.gmra.mxu0 %v331
      %v992 = vpop.f32.mrf.mxu0
      %v993 = vadd.f32 %v784, %v992
      %994 = vmatmul.f32.gmra.mxu0 %v334
      %v995 = vpop.f32.mrf.mxu0
      %v996 = vadd.f32 %v787, %v995
      %997 = vmatmul.f32.gmra.mxu0 %v337
      %v998 = vpop.f32.mrf.mxu0
      %v999 = vadd.f32 %v790, %v998
      %1000 = vmatmul.f32.gmra.mxu0 %v340
      %v1001 = vpop.f32.mrf.mxu0
      %v1002 = vadd.f32 %v793, %v1001
      %1003 = vmatmul.f32.gmra.mxu0 %v343
      %v1004 = vpop.f32.mrf.mxu0
      %v1005 = vadd.f32 %v796, %v1004
      %1006 = vmatmul.f32.gmra.mxu0 %v346
      %v1007 = vpop.f32.mrf.mxu0
      %v1008 = vadd.f32 %v799, %v1007
      %1009 = vmatmul.f32.gmra.mxu0 %v349
      %v1010 = vpop.f32.mrf.mxu0
      %v1011 = vadd.f32 %v802, %v1010
      %1012 = vmatmul.f32.gmra.mxu0 %v352
      %v1013 = vpop.f32.mrf.mxu0
      %v1014 = vadd.f32 %v805, %v1013
      %1015 = vmatmul.f32.gmra.mxu0 %v355
      %v1016 = vpop.f32.mrf.mxu0
      %v1017 = vadd.f32 %v808, %v1016
      %1018 = vmatmul.f32.gmra.mxu0 %v358
      %v1019 = vpop.f32.mrf.mxu0
      %v1020 = vadd.f32 %v811, %v1019
      %1021 = vmatmul.f32.gmra.mxu0 %v361
      %v1022 = vpop.f32.mrf.mxu0
      %v1023 = vadd.f32 %v814, %v1022
      %1024 = vmatmul.f32.gmra.mxu0 %v364
      %v1025 = vpop.f32.mrf.mxu0
      %v1026 = vadd.f32 %v817, %v1025
      %1027 = vmatmul.f32.gmra.mxu0 %v367
      %v1028 = vpop.f32.mrf.mxu0
      %v1029 = vadd.f32 %v820, %v1028
      %1030 = vdwg.mxu0
      %1031 = vmatpush.msra.mxu0 0.0
      %1032 = vmatpush.msra.mxu0 0.0
      %1033 = vmatpush.msra.mxu0 0.0
      %1034 = vmatpush.msra.mxu0 0.0
      %1035 = vmatpush.msra.mxu0 0.0
      %1036 = vmatpush.msra.mxu0 %v611
      %1037 = vmatpush.msra.mxu0 %v410
      %1038 = vmatpush.msra.mxu0 %v409
      %1039 = vmatpush.msra.mxu0 %v408
      %1040 = vmatpush.msra.mxu0 %v407
      %1041 = vmatpush.msra.mxu0 %v406
      %1042 = vmatpush.msra.mxu0 %v405
      %1043 = vmatpush.msra.mxu0 %v404
      %1044 = vmatpush.msra.mxu0 %v403
      %1045 = vmatpush.msra.mxu0 %v402
      %1046 = vmatpush.msra.mxu0 %v401
      %1047 = vmatmul.f32.gmra.mxu0 %v418
      %v1048 = vpop.f32.mrf.mxu0
      %v1049 = vadd.f32 %v840, %v1048
      %1050 = vmatmul.f32.gmra.mxu0 %v421
      %v1051 = vpop.f32.mrf.mxu0
      %v1052 = vadd.f32 %v843, %v1051
      %1053 = vmatmul.f32.gmra.mxu0 %v424
      %v1054 = vpop.f32.mrf.mxu0
      %v1055 = vadd.f32 %v846, %v1054
      %1056 = vmatmul.f32.gmra.mxu0 %v427
      %v1057 = vpop.f32.mrf.mxu0
      %v1058 = vadd.f32 %v849, %v1057
      %1059 = vmatmul.f32.gmra.mxu0 %v430
      %v1060 = vpop.f32.mrf.mxu0
      %v1061 = vadd.f32 %v852, %v1060
      %1062 = vmatmul.f32.gmra.mxu0 %v433
      %v1063 = vpop.f32.mrf.mxu0
      %v1064 = vadd.f32 %v855, %v1063
      %1065 = vmatmul.f32.gmra.mxu0 %v436
      %v1066 = vpop.f32.mrf.mxu0
      %v1067 = vadd.f32 %v858, %v1066
      %1068 = vmatmul.f32.gmra.mxu0 %v439
      %v1069 = vpop.f32.mrf.mxu0
      %v1070 = vadd.f32 %v861, %v1069
      %1071 = vmatmul.f32.gmra.mxu0 %v442
      %v1072 = vpop.f32.mrf.mxu0
      %v1073 = vadd.f32 %v864, %v1072
      %1074 = vmatmul.f32.gmra.mxu0 %v445
      %v1075 = vpop.f32.mrf.mxu0
      %v1076 = vadd.f32 %v867, %v1075
      %1077 = vmatmul.f32.gmra.mxu0 %v448
      %v1078 = vpop.f32.mrf.mxu0
      %v1079 = vadd.f32 %v870, %v1078
      %1080 = vmatmul.f32.gmra.mxu0 %v451
      %v1081 = vpop.f32.mrf.mxu0
      %v1082 = vadd.f32 %v873, %v1081
      %1083 = vmatmul.f32.gmra.mxu0 %v454
      %v1084 = vpop.f32.mrf.mxu0
      %v1085 = vadd.f32 %v876, %v1084
      %1086 = vmatmul.f32.gmra.mxu0 %v457
      %v1087 = vpop.f32.mrf.mxu0
      %v1088 = vadd.f32 %v879, %v1087
      %1089 = vmatmul.f32.gmra.mxu0 %v460
      %v1090 = vpop.f32.mrf.mxu0
      %v1091 = vadd.f32 %v882, %v1090
      %1092 = vmatmul.f32.gmra.mxu0 %v463
      %v1093 = vpop.f32.mrf.mxu0
      %v1094 = vadd.f32 %v885, %v1093
      %1095 = vmatmul.f32.gmra.mxu0 %v466
      %v1096 = vpop.f32.mrf.mxu0
      %v1097 = vadd.f32 %v888, %v1096
      %1098 = vmatmul.f32.gmra.mxu0 %v469
      %v1099 = vpop.f32.mrf.mxu0
      %v1100 = vadd.f32 %v891, %v1099
      %1101 = vmatmul.f32.gmra.mxu0 %v472
      %v1102 = vpop.f32.mrf.mxu0
      %v1103 = vadd.f32 %v894, %v1102
      %1104 = vmatmul.f32.gmra.mxu0 %v475
      %v1105 = vpop.f32.mrf.mxu0
      %v1106 = vadd.f32 %v897, %v1105
      %1107 = vmatmul.f32.gmra.mxu0 %v478
      %v1108 = vpop.f32.mrf.mxu0
      %v1109 = vadd.f32 %v900, %v1108
      %1110 = vmatmul.f32.gmra.mxu0 %v481
      %v1111 = vpop.f32.mrf.mxu0
      %v1112 = vadd.f32 %v903, %v1111
      %1113 = vmatmul.f32.gmra.mxu0 %v484
      %v1114 = vpop.f32.mrf.mxu0
      %v1115 = vadd.f32 %v906, %v1114
      %1116 = vmatmul.f32.gmra.mxu0 %v487
      %v1117 = vpop.f32.mrf.mxu0
      %v1118 = vadd.f32 %v909, %v1117
      %1119 = vmatmul.f32.gmra.mxu0 %v490
      %v1120 = vpop.f32.mrf.mxu0
      %v1121 = vadd.f32 %v912, %v1120
      %1122 = vmatmul.f32.gmra.mxu0 %v493
      %v1123 = vpop.f32.mrf.mxu0
      %v1124 = vadd.f32 %v915, %v1123
      %1125 = vmatmul.f32.gmra.mxu0 %v496
      %v1126 = vpop.f32.mrf.mxu0
      %v1127 = vadd.f32 %v918, %v1126
      %1128 = vmatmul.f32.gmra.mxu0 %v499
      %v1129 = vpop.f32.mrf.mxu0
      %v1130 = vadd.f32 %v921, %v1129
      %1131 = vmatmul.f32.gmra.mxu0 %v502
      %v1132 = vpop.f32.mrf.mxu0
      %v1133 = vadd.f32 %v924, %v1132
      %1134 = vmatmul.f32.gmra.mxu0 %v505
      %v1135 = vpop.f32.mrf.mxu0
      %v1136 = vadd.f32 %v927, %v1135
      %1137 = vmatmul.f32.gmra.mxu0 %v508
      %v1138 = vpop.f32.mrf.mxu0
      %v1139 = vadd.f32 %v930, %v1138
      %1140 = vmatmul.f32.gmra.mxu0 %v511
      %v1141 = vpop.f32.mrf.mxu0
      %v1142 = vadd.f32 %v933, %v1141
      %1143 = vmatmul.f32.gmra.mxu0 %v514
      %v1144 = vpop.f32.mrf.mxu0
      %v1145 = vadd.f32 %v936, %v1144
      %1146 = vmatmul.f32.gmra.mxu0 %v517
      %v1147 = vpop.f32.mrf.mxu0
      %v1148 = vadd.f32 %v939, %v1147
      %1149 = vmatmul.f32.gmra.mxu0 %v520
      %v1150 = vpop.f32.mrf.mxu0
      %v1151 = vadd.f32 %v942, %v1150
      %1152 = vmatmul.f32.gmra.mxu0 %v523
      %v1153 = vpop.f32.mrf.mxu0
      %v1154 = vadd.f32 %v945, %v1153
      %1155 = vmatmul.f32.gmra.mxu0 %v526
      %v1156 = vpop.f32.mrf.mxu0
      %v1157 = vadd.f32 %v948, %v1156
      %1158 = vmatmul.f32.gmra.mxu0 %v529
      %v1159 = vpop.f32.mrf.mxu0
      %v1160 = vadd.f32 %v951, %v1159
      %1161 = vmatmul.f32.gmra.mxu0 %v532
      %v1162 = vpop.f32.mrf.mxu0
      %v1163 = vadd.f32 %v954, %v1162
      %1164 = vmatmul.f32.gmra.mxu0 %v535
      %v1165 = vpop.f32.mrf.mxu0
      %v1166 = vadd.f32 %v957, %v1165
      %1167 = vmatmul.f32.gmra.mxu0 %v538
      %v1168 = vpop.f32.mrf.mxu0
      %v1169 = vadd.f32 %v960, %v1168
      %1170 = vmatmul.f32.gmra.mxu0 %v541
      %v1171 = vpop.f32.mrf.mxu0
      %v1172 = vadd.f32 %v963, %v1171
      %1173 = vmatmul.f32.gmra.mxu0 %v544
      %v1174 = vpop.f32.mrf.mxu0
      %v1175 = vadd.f32 %v966, %v1174
      %1176 = vmatmul.f32.gmra.mxu0 %v547
      %v1177 = vpop.f32.mrf.mxu0
      %v1178 = vadd.f32 %v969, %v1177
      %1179 = vmatmul.f32.gmra.mxu0 %v550
      %v1180 = vpop.f32.mrf.mxu0
      %v1181 = vadd.f32 %v972, %v1180
      %1182 = vmatmul.f32.gmra.mxu0 %v553
      %v1183 = vpop.f32.mrf.mxu0
      %v1184 = vadd.f32 %v975, %v1183
      %1185 = vmatmul.f32.gmra.mxu0 %v556
      %v1186 = vpop.f32.mrf.mxu0
      %v1187 = vadd.f32 %v978, %v1186
      %1188 = vmatmul.f32.gmra.mxu0 %v559
      %v1189 = vpop.f32.mrf.mxu0
      %v1190 = vadd.f32 %v981, %v1189
      %1191 = vmatmul.f32.gmra.mxu0 %v562
      %v1192 = vpop.f32.mrf.mxu0
      %v1193 = vadd.f32 %v984, %v1192
      %1194 = vmatmul.f32.gmra.mxu0 %v565
      %v1195 = vpop.f32.mrf.mxu0
      %v1196 = vadd.f32 %v987, %v1195
      %1197 = vmatmul.f32.gmra.mxu0 %v568
      %v1198 = vpop.f32.mrf.mxu0
      %v1199 = vadd.f32 %v990, %v1198
      %1200 = vmatmul.f32.gmra.mxu0 %v571
      %v1201 = vpop.f32.mrf.mxu0
      %v1202 = vadd.f32 %v993, %v1201
      %1203 = vmatmul.f32.gmra.mxu0 %v574
      %v1204 = vpop.f32.mrf.mxu0
      %v1205 = vadd.f32 %v996, %v1204
      %1206 = vmatmul.f32.gmra.mxu0 %v577
      %v1207 = vpop.f32.mrf.mxu0
      %v1208 = vadd.f32 %v999, %v1207
      %1209 = vmatmul.f32.gmra.mxu0 %v580
      %v1210 = vpop.f32.mrf.mxu0
      %v1211 = vadd.f32 %v1002, %v1210
      %1212 = vmatmul.f32.gmra.mxu0 %v583
      %v1213 = vpop.f32.mrf.mxu0
      %v1214 = vadd.f32 %v1005, %v1213
      %1215 = vmatmul.f32.gmra.mxu0 %v586
      %v1216 = vpop.f32.mrf.mxu0
      %v1217 = vadd.f32 %v1008, %v1216
      %1218 = vmatmul.f32.gmra.mxu0 %v589
      %v1219 = vpop.f32.mrf.mxu0
      %v1220 = vadd.f32 %v1011, %v1219
      %1221 = vmatmul.f32.gmra.mxu0 %v592
      %v1222 = vpop.f32.mrf.mxu0
      %v1223 = vadd.f32 %v1014, %v1222
      %1224 = vmatmul.f32.gmra.mxu0 %v595
      %v1225 = vpop.f32.mrf.mxu0
      %v1226 = vadd.f32 %v1017, %v1225
      %1227 = vmatmul.f32.gmra.mxu0 %v598
      %v1228 = vpop.f32.mrf.mxu0
      %v1229 = vadd.f32 %v1020, %v1228
      %1230 = vmatmul.f32.gmra.mxu0 %v601
      %v1231 = vpop.f32.mrf.mxu0
      %v1232 = vadd.f32 %v1023, %v1231
      %1233 = vmatmul.f32.gmra.mxu0 %v604
      %v1234 = vpop.f32.mrf.mxu0
      %v1235 = vadd.f32 %v1026, %v1234
      %1236 = vmatmul.f32.gmra.mxu0 %v607
      %v1237 = vpop.f32.mrf.mxu0
      %v1238 = vadd.f32 %v1029, %v1237
      %1239 = vdwg.mxu0
      %vm1240 = vcmask 130048
      %1241 = vst.msk [vmem:[%s175] sm:$0xff] %vm1240, %v1049
      %1242 = vst.msk [vmem:[%s175 + $0x8] sm:$0xff] %vm1240, %v1052
      %1243 = vst.msk [vmem:[%s175 + $0x10] sm:$0xff] %vm1240, %v1055
      %1244 = vst.msk [vmem:[%s175 + $0x18] sm:$0xff] %vm1240, %v1058
      %1245 = vst.msk [vmem:[%s175 + $0x20] sm:$0xff] %vm1240, %v1061
      %1246 = vst.msk [vmem:[%s175 + $0x28] sm:$0xff] %vm1240, %v1064
      %1247 = vst.msk [vmem:[%s175 + $0x30] sm:$0xff] %vm1240, %v1067
      %1248 = vst.msk [vmem:[%s175 + $0x38] sm:$0xff] %vm1240, %v1070
      %1249 = vst.msk [vmem:[%s175 + $0x40] sm:$0xff] %vm1240, %v1073
      %1250 = vst.msk [vmem:[%s175 + $0x48] sm:$0xff] %vm1240, %v1076
      %1251 = vst.msk [vmem:[%s175 + $0x50] sm:$0xff] %vm1240, %v1079
      %1252 = vst.msk [vmem:[%s175 + $0x58] sm:$0xff] %vm1240, %v1082
      %1253 = vst.msk [vmem:[%s175 + $0x60] sm:$0xff] %vm1240, %v1085
      %1254 = vst.msk [vmem:[%s175 + $0x68] sm:$0xff] %vm1240, %v1088
      %1255 = vst.msk [vmem:[%s175 + $0x70] sm:$0xff] %vm1240, %v1091
      %1256 = vst.msk [vmem:[%s175 + $0x78] sm:$0xff] %vm1240, %v1094
      %1257 = vst.msk [vmem:[%s175 + $0x80] sm:$0xff] %vm1240, %v1097
      %1258 = vst.msk [vmem:[%s175 + $0x88] sm:$0xff] %vm1240, %v1100
      %1259 = vst.msk [vmem:[%s175 + $0x90] sm:$0xff] %vm1240, %v1103
      %1260 = vst.msk [vmem:[%s175 + $0x98] sm:$0xff] %vm1240, %v1106
      %1261 = vst.msk [vmem:[%s175 + $0xa0] sm:$0xff] %vm1240, %v1109
      %1262 = vst.msk [vmem:[%s175 + $0xa8] sm:$0xff] %vm1240, %v1112
      %1263 = vst.msk [vmem:[%s175 + $0xb0] sm:$0xff] %vm1240, %v1115
      %1264 = vst.msk [vmem:[%s175 + $0xb8] sm:$0xff] %vm1240, %v1118
      %1265 = vst.msk [vmem:[%s175 + $0xc0] sm:$0xff] %vm1240, %v1121
      %1266 = vst.msk [vmem:[%s175 + $0xc8] sm:$0xff] %vm1240, %v1124
      %1267 = vst.msk [vmem:[%s175 + $0xd0] sm:$0xff] %vm1240, %v1127
      %1268 = vst.msk [vmem:[%s175 + $0xd8] sm:$0xff] %vm1240, %v1130
      %1269 = vst.msk [vmem:[%s175 + $0xe0] sm:$0xff] %vm1240, %v1133
      %1270 = vst.msk [vmem:[%s175 + $0xe8] sm:$0xff] %vm1240, %v1136
      %1271 = vst.msk [vmem:[%s175 + $0xf0] sm:$0xff] %vm1240, %v1139
      %1272 = vst.msk [vmem:[%s175 + $0xf8] sm:$0xff] %vm1240, %v1142
      %1273 = vst.msk [vmem:[%s175 + $0x100] sm:$0xff] %vm1240, %v1145
      %1274 = vst.msk [vmem:[%s175 + $0x108] sm:$0xff] %vm1240, %v1148
      %1275 = vst.msk [vmem:[%s175 + $0x110] sm:$0xff] %vm1240, %v1151
      %1276 = vst.msk [vmem:[%s175 + $0x118] sm:$0xff] %vm1240, %v1154
      %1277 = vst.msk [vmem:[%s175 + $0x120] sm:$0xff] %vm1240, %v1157
      %1278 = vst.msk [vmem:[%s175 + $0x128] sm:$0xff] %vm1240, %v1160
      %1279 = vst.msk [vmem:[%s175 + $0x130] sm:$0xff] %vm1240, %v1163
      %1280 = vst.msk [vmem:[%s175 + $0x138] sm:$0xff] %vm1240, %v1166
      %1281 = vst.msk [vmem:[%s175 + $0x140] sm:$0xff] %vm1240, %v1169
      %1282 = vst.msk [vmem:[%s175 + $0x148] sm:$0xff] %vm1240, %v1172
      %1283 = vst.msk [vmem:[%s175 + $0x150] sm:$0xff] %vm1240, %v1175
      %1284 = vst.msk [vmem:[%s175 + $0x158] sm:$0xff] %vm1240, %v1178
      %1285 = vst.msk [vmem:[%s175 + $0x160] sm:$0xff] %vm1240, %v1181
      %1286 = vst.msk [vmem:[%s175 + $0x168] sm:$0xff] %vm1240, %v1184
      %1287 = vst.msk [vmem:[%s175 + $0x170] sm:$0xff] %vm1240, %v1187
      %1288 = vst.msk [vmem:[%s175 + $0x178] sm:$0xff] %vm1240, %v1190
      %1289 = vst.msk [vmem:[%s175 + $0x180] sm:$0xff] %vm1240, %v1193
      %1290 = vst.msk [vmem:[%s175 + $0x188] sm:$0xff] %vm1240, %v1196
      %1291 = vst.msk [vmem:[%s175 + $0x190] sm:$0xff] %vm1240, %v1199
      %1292 = vst.msk [vmem:[%s175 + $0x198] sm:$0xff] %vm1240, %v1202
      %1293 = vst.msk [vmem:[%s175 + $0x1a0] sm:$0xff] %vm1240, %v1205
      %1294 = vst.msk [vmem:[%s175 + $0x1a8] sm:$0xff] %vm1240, %v1208
      %1295 = vst.msk [vmem:[%s175 + $0x1b0] sm:$0xff] %vm1240, %v1211
      %1296 = vst.msk [vmem:[%s175 + $0x1b8] sm:$0xff] %vm1240, %v1214
      %1297 = vst.msk [vmem:[%s175 + $0x1c0] sm:$0xff] %vm1240, %v1217
      %1298 = vst.msk [vmem:[%s175 + $0x1c8] sm:$0xff] %vm1240, %v1220
      %1299 = vst.msk [vmem:[%s175 + $0x1d0] sm:$0xff] %vm1240, %v1223
      %1300 = vst.msk [vmem:[%s175 + $0x1d8] sm:$0xff] %vm1240, %v1226
      %1301 = vst.msk [vmem:[%s175 + $0x1e0] sm:$0xff] %vm1240, %v1229
      %1302 = vst.msk [vmem:[%s175 + $0x1e8] sm:$0xff] %vm1240, %v1232
      %1303 = vst.msk [vmem:[%s175 + $0x1f0] sm:$0xff] %vm1240, %v1235
      %1304 = vst.msk [vmem:[%s175 + $0x1f8] sm:$0xff] %vm1240, %v1238
      %s1305 = smul.u32 64, %s14
      %p1306 = scmp.lt.s32.totalorder %s1305, 127
      %s1307 = scalar_select %p1306, %s1305, 127
      %s1308 = smul.addr %s1307, 8
      %s1309 = scalar_lea.vmem %s3, %s1308
      // Predicated region
      $region33: #{tpu_custom_call.1} parent=31 // pred_check
        %p1310 = pneg %p100
      $region34: #{tpu_custom_call.1} parent=31 // pred_check_branch
        %1312 = sbr.rel (%p1310) target = $region36
      $region35: #{tpu_custom_call.1} parent=31 // pred_region
        %s1313 = smul.u32 64, %s14
      $region36: #{tpu_custom_call.1} parent=31 // pred_fallthru
        _
    $region32: #{tpu_custom_call.1} parent=5 // pred_fallthru
      _
    %p1314 = scmp.le.s32.totalorder 2, %s9
    // Predicated region
    $region37: #{tpu_custom_call.1} parent=5 // pred_check
      %p1315 = pneg %p1314
    $region38: #{tpu_custom_call.1} parent=5 // pred_check_branch
      %1317 = sbr.rel (%p1315) target = $region40
    $region39: #{tpu_custom_call.1} parent=5 // pred_region
      %s1318 = ssub.s32 %s9, 2
      // Predicated region
      $region41: #{tpu_custom_call.1} parent=39 // pred_check
        %p1319 = pneg %p106
      $region42: #{tpu_custom_call.1} parent=39 // pred_check_branch
        %1321 = sbr.rel (%p1319) target = $region44
      $region43: #{tpu_custom_call.1} parent=39 // pred_region
        %s1322 = smul.u32 64, %s15
        %p1323 = scmp.lt.s32.totalorder %s1322, 127
        %s1324 = scalar_select %p1323, %s1322, 127
        %s1325 = smul.addr %s1324, 8
        %s1326 = scalar_lea.vmem %s3, %s1325
      $region44: #{tpu_custom_call.1} parent=39 // pred_fallthru
        _
    $region40: #{tpu_custom_call.1} parent=5 // pred_fallthru
      _
  $region6: #{tpu_custom_call.1} parent=0 // loop_footer
    %s13 = sadd.s32 1, %s9
  $region7: #{tpu_custom_call.1} parent=0 // loop_footer_branch
    %8 = sbr.rel target = $region3
  $region8: #{tpu_custom_call.1} parent=0 // loop_exit
    _

</llo_original>
